<compile_context>
chip_gen: v7x
topology: tpu7x:2x2x1
jax: 0.10.0
libtpu: 0.0.40
codegen_flags: <defaults>
</compile_context>

<pallas_src>
import functools

import jax
import jax.numpy as jnp
from jax import lax
from jax.experimental import pallas as pl
from jax.experimental.pallas import tpu as pltpu

HEADS = 2
NEG_SLOPE = 0.2
OUT_PAD = 128  # lane-dense final-output width


def _attention_heads(x_full, x_tile, mask_bias, w_ref, ws_ref, wd_ref, f_out):
    """Shared per-head GAT attention + aggregation.

    Returns a list of per-head aggregated features [TM, f_out] (no concat).
      x_full:    [N, F_in]   all source nodes
      x_tile:    [TM, F_in]  destination-row tile
      mask_bias: [TM, N]     0 where edge src->dst exists, -1e30 otherwise
      w_ref:     [F_in, HEADS*f_out]  feature projection
      ws_ref:    [F_in, HEADS]        folded source-attention columns
      wd_ref:    [F_in, HEADS]        folded destination-attention columns
    """
    # All matmul inputs kept f32 at these toy sizes for exact parity; for large
    # N/F cast matmul operands to bf16 (f32 accumulate) on v5e/v6e/v7x.
    feat = jnp.dot(x_full, w_ref[...], preferred_element_type=jnp.float32)      # [N, H*f]
    d_sc = jnp.dot(x_tile, wd_ref[...], preferred_element_type=jnp.float32)     # [TM, H]
    # Source scores for both heads in ONE small matmul, produced lane-major
    # ([HEADS, N]) so they broadcast across the dst (sublane) axis directly.
    s_sc = lax.dot_general(ws_ref[...], x_full, (((0,), (1,)), ((), ())),
                           preferred_element_type=jnp.float32)                  # [H, N]

    outs = []
    for hd in range(HEADS):
        e = d_sc[:, hd:hd + 1] + s_sc[hd:hd + 1, :]          # [TM, N]
        e = jnp.where(e > 0, e, NEG_SLOPE * e)               # LeakyReLU(0.2)
        e = e + mask_bias                                    # single additive mask
        m = jnp.max(e, axis=-1, keepdims=True)               # finite (self-loops)
        p = jnp.exp(e - m)                                   # non-edges underflow to 0
        s = jnp.maximum(jnp.sum(p, axis=-1, keepdims=True), 1e-30)
        alpha = p * pl.reciprocal(s, approx=True)            # divide on the EUP slot
        outs.append(jnp.dot(alpha, feat[:, hd * f_out:(hd + 1) * f_out],
                            preferred_element_type=jnp.float32))                # [TM, f]
    return outs


def gat_layer1_kernel(x_full_ref, x_tile_ref, mb_ref, w_ref, ws_ref, wd_ref,
                      b_ref, out_ref, *, f_out):
    """GATConv(F, F, heads=2) + bias + ReLU for one destination-row tile."""
    heads = _attention_heads(x_full_ref[...], x_tile_ref[...], mb_ref[...],
                             w_ref, ws_ref, wd_ref, f_out)
    b = b_ref[...]
    for hd in range(HEADS):
        sl = slice(hd * f_out, (hd + 1) * f_out)
        # Write each head straight into its lane slice -- no concatenate.
        out_ref[:, sl] = jnp.maximum(heads[hd] + b[:, sl], 0.0)


def gat_layer2_kernel(h_full_ref, h_tile_ref, mb_ref, w_ref, ws_ref, wd_ref,
                      w3_ref, bfold_ref, out_ref, *, f_out):
    """GATConv(2F, F, heads=2) fused with Linear(2F, OUT) (bias pre-folded)."""
    heads = _attention_heads(h_full_ref[...], h_tile_ref[...], mb_ref[...],
                             w_ref, ws_ref, wd_ref, f_out)
    acc = None
    for hd in range(HEADS):
        # concat(heads) @ W3  ==  sum_h heads[h] @ W3[h*f:(h+1)*f, :]
        contrib = jnp.dot(heads[hd], w3_ref[hd * f_out:(hd + 1) * f_out, :],
                          preferred_element_type=jnp.float32)                   # [TM, 128]
        acc = contrib if acc is None else acc + contrib
    out_ref[...] = (acc + bfold_ref[...]).astype(out_ref.dtype)


def _fold_attention(w, att):
    """w: [F_in, HEADS*f], att: [HEADS, f] -> folded columns [F_in, HEADS]."""
    f_in, hf = w.shape
    f = hf // HEADS
    cols = [w[:, h * f:(h + 1) * f] @ att[h] for h in range(HEADS)]
    return jnp.stack(cols, axis=1)


def _row_tile(n):
    # Simple tile chooser: largest of (512, 256, 128) dividing N, else whole N.
    # For v7x (64 MiB VMEM) prefer <=256 at large N; at toy sizes TM == N.
    for t in (512, 256, 128):
        if n % t == 0:
            return t
    return n


@jax.jit
def gat_forward(x, adj, params):
    """x: [N, F] node features, adj: [N_dst, N_src] edge mask (self-loops incl.)."""
    N, F = x.shape
    OUT = params["w3"].shape[1]
    NF = HEADS * F
    TM = _row_tile(N)
    grid = (N // TM,)

    # ---- wrapper-side precompute (one-time, tiny) --------------------------
    mask_bias = jnp.where(adj > 0, 0.0, -1e30).astype(jnp.float32)   # reused by both layers
    ws1 = _fold_attention(params["w1"], params["as1"])               # [F, HEADS]
    wd1 = _fold_attention(params["w1"], params["ad1"])
    ws2 = _fold_attention(params["w2"], params["as2"])               # [2F, HEADS]
    wd2 = _fold_attention(params["w2"], params["ad2"])
    # Lane-dense final projection: pad OUT -> 128 with zero columns and fold
    # conv2's bias through it:  y = sum_h agg_h @ W3_h + (b2 @ W3 + b3).
    w3_pad = jnp.zeros((NF, OUT_PAD), jnp.float32).at[:, :OUT].set(params["w3"])
    b3_pad = jnp.zeros((1, OUT_PAD), jnp.float32).at[:, :OUT].set(params["b3"])
    b_fold = params["b2"] @ w3_pad + b3_pad                          # [1, 128]

    cp = pltpu.CompilerParams(
        dimension_semantics=("parallel",),          # dst-row tiles are independent
        vmem_limit_bytes=48 * 1024 * 1024,          # explicit; re-derive TM for v7x (64 MiB)
    )

    # ---- layer 1: GATConv + ReLU, tiled over destination rows --------------
    h1 = pl.pallas_call(
        functools.partial(gat_layer1_kernel, f_out=F),
        out_shape=jax.ShapeDtypeStruct((N, NF), jnp.float32),
        grid=grid,
        in_specs=[
            pl.BlockSpec((N, F), lambda i: (0, 0)),          # x (all source nodes)
            pl.BlockSpec((TM, F), lambda i: (i, 0)),         # x (dst-row tile)
            pl.BlockSpec((TM, N), lambda i: (i, 0)),         # mask bias tile
            pl.BlockSpec((F, NF), lambda i: (0, 0)),         # W1
            pl.BlockSpec((F, HEADS), lambda i: (0, 0)),      # folded att_src cols
            pl.BlockSpec((F, HEADS), lambda i: (0, 0)),      # folded att_dst cols
            pl.BlockSpec((1, NF), lambda i: (0, 0)),         # b1
        ],
        out_specs=pl.BlockSpec((TM, NF), lambda i: (i, 0)),
        compiler_params=cp,
    )(x, x, mask_bias, params["w1"], ws1, wd1, params["b1"])

    # ---- layer 2: GATConv fused with the final Linear (lane-dense output) --
    y_pad = pl.pallas_call(
        functools.partial(gat_layer2_kernel, f_out=F),
        out_shape=jax.ShapeDtypeStruct((N, OUT_PAD), jnp.float32),
        grid=grid,
        in_specs=[
            pl.BlockSpec((N, NF), lambda i: (0, 0)),         # h1 (all source nodes)
            pl.BlockSpec((TM, NF), lambda i: (i, 0)),        # h1 (dst-row tile)
            pl.BlockSpec((TM, N), lambda i: (i, 0)),         # mask bias tile
            pl.BlockSpec((NF, NF), lambda i: (0, 0)),        # W2
            pl.BlockSpec((NF, HEADS), lambda i: (0, 0)),     # folded att_src cols
            pl.BlockSpec((NF, HEADS), lambda i: (0, 0)),     # folded att_dst cols
            pl.BlockSpec((NF, OUT_PAD), lambda i: (0, 0)),   # padded W3
            pl.BlockSpec((1, OUT_PAD), lambda i: (0, 0)),    # folded bias (b2@W3 + b3)
        ],
        out_specs=pl.BlockSpec((TM, OUT_PAD), lambda i: (i, 0)),
        compiler_params=cp,
    )(h1, h1, mask_bias, params["w2"], ws2, wd2, w3_pad, b_fold)

    return y_pad[:, :OUT]


def gat_reference(x, adj, params, f):
    """Pure-JAX reference of the same forward pass (eval mode)."""
    def gatconv(h, w, a_s, a_d, b):
        hp = h @ w
        outs = []
        for hd in range(HEADS):
            xh = hp[:, hd * f:(hd + 1) * f]
            a_src = xh @ a_s[hd]
            a_dst = xh @ a_d[hd]
            e = a_dst[:, None] + a_src[None, :]
            e = jnp.where(e > 0, e, NEG_SLOPE * e)
            e = jnp.where(adj > 0, e, -jnp.inf)
            alpha = jax.nn.softmax(e, axis=-1)
            outs.append(alpha @ xh)
        return jnp.concatenate(outs, axis=-1) + b
    h = gatconv(x, params["w1"], params["as1"], params["ad1"], params["b1"])
    h = jnp.maximum(h, 0.0)
    h = gatconv(h, params["w2"], params["as2"], params["ad2"], params["b2"])
    return h @ params["w3"] + params["b3"]


if __name__ == "__main__":
    key = jax.random.PRNGKey(0)
    N, F, OUT, E = 16, 16, 8, 48          # nodes, in_features, out_features, edges
    ks = jax.random.split(key, 16)

    x = jax.random.normal(ks[0], (N, F), jnp.float32)
    src = jax.random.randint(ks[1], (E,), 0, N)
    dst = jax.random.randint(ks[2], (E,), 0, N)
    edge_index = jnp.stack([src, dst])                         # [2, E], PyG convention
    edge_attr = jax.random.normal(ks[3], (E, 4), jnp.float32)  # ignored (edge_dim=None)

    # Dense adjacency with self-loops: adj[dst, src] = 1 (GATConv add_self_loops).
    adj = jnp.zeros((N, N), jnp.float32).at[dst, src].set(1.0)
    adj = jnp.maximum(adj, jnp.eye(N, dtype=jnp.float32))

    def init(k, shape, scale=0.1):
        return scale * jax.random.normal(k, shape, jnp.float32)

    params = {
        # conv1: GATConv(F, F, heads=2)
        "w1":  init(ks[4],  (F, HEADS * F)),
        "as1": init(ks[5],  (HEADS, F)),
        "ad1": init(ks[6],  (HEADS, F)),
        "b1":  init(ks[7],  (1, HEADS * F)),
        # conv2: GATConv(2F, F, heads=2)
        "w2":  init(ks[8],  (HEADS * F, HEADS * F)),
        "as2": init(ks[9],  (HEADS, F)),
        "ad2": init(ks[10], (HEADS, F)),
        "b2":  init(ks[11], (1, HEADS * F)),
        # lin1: Linear(2F, OUT)
        "w3":  init(ks[12], (HEADS * F, OUT)),
        "b3":  init(ks[13], (1, OUT)),
    }

    # TODO(synk): F.dropout(p=0.5..0.9) is identity in eval mode (training=False);
    # training-mode dropout would use pltpu.prng_seed/prng_random_bits.
    out = gat_forward(x, adj, params)
    jax.block_until_ready(out)
    assert out.shape == (N, OUT)

    ref = gat_reference(x, adj, params, F)
    assert jnp.allclose(out, ref, atol=2e-2, rtol=2e-2), "kernel mismatch vs reference"

    print("KERNEL_OK")
</pallas_src>

<mosaic_0001>
module attributes {stable_mosaic.version = 11 : i64} {
  func.func @gat_layer1_kernel(%arg0: i32, %arg1: memref<16x16xf32, #tpu.memory_space<vmem>>, %arg2: memref<16x16xf32, #tpu.memory_space<vmem>>, %arg3: memref<16x16xf32, #tpu.memory_space<vmem>>, %arg4: memref<16x32xf32, #tpu.memory_space<vmem>>, %arg5: memref<16x2xf32, #tpu.memory_space<vmem>>, %arg6: memref<16x2xf32, #tpu.memory_space<vmem>>, %arg7: memref<1x32xf32, #tpu.memory_space<vmem>>, %arg8: memref<16x32xf32, #tpu.memory_space<vmem>>) attributes {dimension_semantics = [#tpu.dimension_semantics<parallel>], iteration_bounds = array<i64: 1>, scalar_prefetch = 0 : i64, scratch_operands = 0 : i64, tpu.core_type = #tpu.core_type<tc>, window_params = [{pipeline_mode = #tpu.pipeline_mode<synchronous>, transform_indices = @transform_0, window_bounds = array<i64: 16, 16>}, {transform_indices = @transform_1, window_bounds = array<i64: 16, 16>}, {transform_indices = @transform_2, window_bounds = array<i64: 16, 16>}, {pipeline_mode = #tpu.pipeline_mode<synchronous>, transform_indices = @transform_3, window_bounds = array<i64: 16, 32>}, {pipeline_mode = #tpu.pipeline_mode<synchronous>, transform_indices = @transform_4, window_bounds = array<i64: 16, 2>}, {pipeline_mode = #tpu.pipeline_mode<synchronous>, transform_indices = @transform_5, window_bounds = array<i64: 16, 2>}, {pipeline_mode = #tpu.pipeline_mode<synchronous>, transform_indices = @transform_6, window_bounds = array<i64: 1, 32>}, {transform_indices = @transform_7, window_bounds = array<i64: 16, 32>}]} {
    %c0 = arith.constant 0 : index
    %c0_0 = arith.constant 0 : index
    %0 = vector.load %arg1[%c0, %c0_0] : memref<16x16xf32, #tpu.memory_space<vmem>>, vector<16x16xf32>
    %c0_1 = arith.constant 0 : index
    %c0_2 = arith.constant 0 : index
    %1 = vector.load %arg2[%c0_1, %c0_2] : memref<16x16xf32, #tpu.memory_space<vmem>>, vector<16x16xf32>
    %c0_3 = arith.constant 0 : index
    %c0_4 = arith.constant 0 : index
    %2 = vector.load %arg3[%c0_3, %c0_4] : memref<16x16xf32, #tpu.memory_space<vmem>>, vector<16x16xf32>
    %c0_5 = arith.constant 0 : index
    %c0_6 = arith.constant 0 : index
    %3 = vector.load %arg4[%c0_5, %c0_6] : memref<16x32xf32, #tpu.memory_space<vmem>>, vector<16x32xf32>
    %cst = arith.constant dense<0.000000e+00> : vector<16x32xf32>
    %4 = tpu.matmul %0, %3, %cst {dimension_numbers = #tpu.dot_dimension_numbers<[1], [0], [0], [1], [0, 0, 1, 1], [], []>} : vector<16x16xf32>, vector<16x32xf32>, vector<16x32xf32> -> vector<16x32xf32>
    %c0_7 = arith.constant 0 : index
    %c0_8 = arith.constant 0 : index
    %5 = vector.load %arg6[%c0_7, %c0_8] : memref<16x2xf32, #tpu.memory_space<vmem>>, vector<16x2xf32>
    %cst_9 = arith.constant dense<0.000000e+00> : vector<16x2xf32>
    %6 = tpu.matmul %1, %5, %cst_9 {dimension_numbers = #tpu.dot_dimension_numbers<[1], [0], [0], [1], [0, 0, 1, 1], [], []>} : vector<16x16xf32>, vector<16x2xf32>, vector<16x2xf32> -> vector<16x2xf32>
    %c0_10 = arith.constant 0 : index
    %c0_11 = arith.constant 0 : index
    %7 = vector.load %arg5[%c0_10, %c0_11] : memref<16x2xf32, #tpu.memory_space<vmem>>, vector<16x2xf32>
    %cst_12 = arith.constant dense<0.000000e+00> : vector<2x16xf32>
    %8 = tpu.matmul %7, %0, %cst_12 {dimension_numbers = #tpu.dot_dimension_numbers<[0], [1], [1], [0], [0, 1, 1, 0], [], []>} : vector<16x2xf32>, vector<16x16xf32>, vector<2x16xf32> -> vector<2x16xf32>
    %9 = vector.extract_strided_slice %6 {offsets = [0, 0], sizes = [16, 1], strides = [1, 1]} : vector<16x2xf32> to vector<16x1xf32>
    %10 = vector.extract_strided_slice %8 {offsets = [0, 0], sizes = [1, 16], strides = [1, 1]} : vector<2x16xf32> to vector<1x16xf32>
    %11 = vector.broadcast %9 : vector<16x1xf32> to vector<16x16xf32>
    %12 = vector.broadcast %10 : vector<1x16xf32> to vector<16x16xf32>
    %13 = arith.addf %11, %12 : vector<16x16xf32>
    %cst_13 = arith.constant 0.000000e+00 : f32
    %14 = vector.broadcast %cst_13 : f32 to vector<16x16xf32>
    %15 = arith.cmpf ogt, %13, %14 : vector<16x16xf32>
    %cst_14 = arith.constant 2.000000e-01 : f32
    %16 = vector.broadcast %cst_14 : f32 to vector<16x16xf32>
    %17 = arith.mulf %16, %13 : vector<16x16xf32>
    %18 = arith.select %15, %13, %17 : vector<16x16xi1>, vector<16x16xf32>
    %19 = arith.addf %18, %2 : vector<16x16xf32>
    %cst_15 = arith.constant dense<0xFF800000> : vector<16xf32>
    %20 = vector.multi_reduction <maximumf>, %19, %cst_15 [1] : vector<16x16xf32> to vector<16xf32>
    %21 = vector.shape_cast %20 : vector<16xf32> to vector<16x1xf32>
    %22 = vector.broadcast %21 : vector<16x1xf32> to vector<16x16xf32>
    %23 = arith.subf %19, %22 : vector<16x16xf32>
    %24 = math.exp %23 : vector<16x16xf32>
    %cst_16 = arith.constant dense<0.000000e+00> : vector<16xf32>
    %25 = vector.multi_reduction <add>, %24, %cst_16 [1] : vector<16x16xf32> to vector<16xf32>
    %26 = vector.shape_cast %25 : vector<16xf32> to vector<16x1xf32>
    %cst_17 = arith.constant 1.000000e-30 : f32
    %27 = vector.broadcast %cst_17 : f32 to vector<16x1xf32>
    %28 = arith.maximumf %26, %27 : vector<16x1xf32>
    %29 = tpu.reciprocal %28 {approx = true} : vector<16x1xf32> -> vector<16x1xf32>
    %30 = vector.broadcast %29 : vector<16x1xf32> to vector<16x16xf32>
    %31 = arith.mulf %24, %30 : vector<16x16xf32>
    %32 = vector.extract_strided_slice %4 {offsets = [0, 0], sizes = [16, 16], strides = [1, 1]} : vector<16x32xf32> to vector<16x16xf32>
    %cst_18 = arith.constant dense<0.000000e+00> : vector<16x16xf32>
    %33 = tpu.matmul %31, %32, %cst_18 {dimension_numbers = #tpu.dot_dimension_numbers<[1], [0], [0], [1], [0, 0, 1, 1], [], []>} : vector<16x16xf32>, vector<16x16xf32>, vector<16x16xf32> -> vector<16x16xf32>
    %34 = vector.extract_strided_slice %6 {offsets = [0, 1], sizes = [16, 1], strides = [1, 1]} : vector<16x2xf32> to vector<16x1xf32>
    %35 = vector.extract_strided_slice %8 {offsets = [1, 0], sizes = [1, 16], strides = [1, 1]} : vector<2x16xf32> to vector<1x16xf32>
    %36 = vector.broadcast %34 : vector<16x1xf32> to vector<16x16xf32>
    %37 = vector.broadcast %35 : vector<1x16xf32> to vector<16x16xf32>
    %38 = arith.addf %36, %37 : vector<16x16xf32>
    %cst_19 = arith.constant 0.000000e+00 : f32
    %39 = vector.broadcast %cst_19 : f32 to vector<16x16xf32>
    %40 = arith.cmpf ogt, %38, %39 : vector<16x16xf32>
    %cst_20 = arith.constant 2.000000e-01 : f32
    %41 = vector.broadcast %cst_20 : f32 to vector<16x16xf32>
    %42 = arith.mulf %41, %38 : vector<16x16xf32>
    %43 = arith.select %40, %38, %42 : vector<16x16xi1>, vector<16x16xf32>
    %44 = arith.addf %43, %2 : vector<16x16xf32>
    %cst_21 = arith.constant dense<0xFF800000> : vector<16xf32>
    %45 = vector.multi_reduction <maximumf>, %44, %cst_21 [1] : vector<16x16xf32> to vector<16xf32>
    %46 = vector.shape_cast %45 : vector<16xf32> to vector<16x1xf32>
    %47 = vector.broadcast %46 : vector<16x1xf32> to vector<16x16xf32>
    %48 = arith.subf %44, %47 : vector<16x16xf32>
    %49 = math.exp %48 : vector<16x16xf32>
    %cst_22 = arith.constant dense<0.000000e+00> : vector<16xf32>
    %50 = vector.multi_reduction <add>, %49, %cst_22 [1] : vector<16x16xf32> to vector<16xf32>
    %51 = vector.shape_cast %50 : vector<16xf32> to vector<16x1xf32>
    %cst_23 = arith.constant 1.000000e-30 : f32
    %52 = vector.broadcast %cst_23 : f32 to vector<16x1xf32>
    %53 = arith.maximumf %51, %52 : vector<16x1xf32>
    %54 = tpu.reciprocal %53 {approx = true} : vector<16x1xf32> -> vector<16x1xf32>
    %55 = vector.broadcast %54 : vector<16x1xf32> to vector<16x16xf32>
    %56 = arith.mulf %49, %55 : vector<16x16xf32>
    %57 = vector.extract_strided_slice %4 {offsets = [0, 16], sizes = [16, 16], strides = [1, 1]} : vector<16x32xf32> to vector<16x16xf32>
    %cst_24 = arith.constant dense<0.000000e+00> : vector<16x16xf32>
    %58 = tpu.matmul %56, %57, %cst_24 {dimension_numbers = #tpu.dot_dimension_numbers<[1], [0], [0], [1], [0, 0, 1, 1], [], []>} : vector<16x16xf32>, vector<16x16xf32>, vector<16x16xf32> -> vector<16x16xf32>
    %c0_25 = arith.constant 0 : index
    %c0_26 = arith.constant 0 : index
    %59 = vector.load %arg7[%c0_25, %c0_26] : memref<1x32xf32, #tpu.memory_space<vmem>>, vector<1x32xf32>
    %60 = vector.extract_strided_slice %59 {offsets = [0, 0], sizes = [1, 16], strides = [1, 1]} : vector<1x32xf32> to vector<1x16xf32>
    %61 = vector.broadcast %60 : vector<1x16xf32> to vector<16x16xf32>
    %62 = arith.addf %33, %61 : vector<16x16xf32>
    %cst_27 = arith.constant 0.000000e+00 : f32
    %63 = vector.broadcast %cst_27 : f32 to vector<16x16xf32>
    %64 = arith.maximumf %62, %63 : vector<16x16xf32>
    %c0_28 = arith.constant 0 : index
    %c0_29 = arith.constant 0 : index
    %65 = vector.load %arg8[%c0_28, %c0_29] : memref<16x32xf32, #tpu.memory_space<vmem>>, vector<16x16xf32>
    tpu.vector_store %arg8[%c0_28, %c0_29], %64 {strides = array<i32>} : memref<16x32xf32, #tpu.memory_space<vmem>>, vector<16x16xf32>,
    %66 = vector.extract_strided_slice %59 {offsets = [0, 16], sizes = [1, 16], strides = [1, 1]} : vector<1x32xf32> to vector<1x16xf32>
    %67 = vector.broadcast %66 : vector<1x16xf32> to vector<16x16xf32>
    %68 = arith.addf %58, %67 : vector<16x16xf32>
    %cst_30 = arith.constant 0.000000e+00 : f32
    %69 = vector.broadcast %cst_30 : f32 to vector<16x16xf32>
    %70 = arith.maximumf %68, %69 : vector<16x16xf32>
    %c0_31 = arith.constant 0 : index
    %c16 = arith.constant 16 : index
    %71 = vector.load %arg8[%c0_31, %c16] : memref<16x32xf32, #tpu.memory_space<vmem>>, vector<16x16xf32>
    tpu.vector_store %arg8[%c0_31, %c16], %70 {strides = array<i32>} : memref<16x32xf32, #tpu.memory_space<vmem>>, vector<16x16xf32>,
    return
  }
  func.func @transform_0(%arg0: i32) -> (i32, i32) {
    %c0_i32 = arith.constant 0 : i32
    %c0_i32_0 = arith.constant 0 : i32
    %c0_i32_1 = arith.constant 0 : i32
    return %c0_i32, %c0_i32_0 : i32, i32
  }
  func.func @transform_1(%arg0: i32) -> (i32, i32) {
    %c0_i32 = arith.constant 0 : i32
    %c0_i32_0 = arith.constant 0 : i32
    return %arg0, %c0_i32 : i32, i32
  }
  func.func @transform_2(%arg0: i32) -> (i32, i32) {
    %c0_i32 = arith.constant 0 : i32
    %c0_i32_0 = arith.constant 0 : i32
    return %arg0, %c0_i32 : i32, i32
  }
  func.func @transform_3(%arg0: i32) -> (i32, i32) {
    %c0_i32 = arith.constant 0 : i32
    %c0_i32_0 = arith.constant 0 : i32
    %c0_i32_1 = arith.constant 0 : i32
    return %c0_i32, %c0_i32_0 : i32, i32
  }
  func.func @transform_4(%arg0: i32) -> (i32, i32) {
    %c0_i32 = arith.constant 0 : i32
    %c0_i32_0 = arith.constant 0 : i32
    %c0_i32_1 = arith.constant 0 : i32
    return %c0_i32, %c0_i32_0 : i32, i32
  }
  func.func @transform_5(%arg0: i32) -> (i32, i32) {
    %c0_i32 = arith.constant 0 : i32
    %c0_i32_0 = arith.constant 0 : i32
    %c0_i32_1 = arith.constant 0 : i32
    return %c0_i32, %c0_i32_0 : i32, i32
  }
  func.func @transform_6(%arg0: i32) -> (i32, i32) {
    %c0_i32 = arith.constant 0 : i32
    %c0_i32_0 = arith.constant 0 : i32
    %c0_i32_1 = arith.constant 0 : i32
    return %c0_i32, %c0_i32_0 : i32, i32
  }
  func.func @transform_7(%arg0: i32) -> (i32, i32) {
    %c0_i32 = arith.constant 0 : i32
    %c0_i32_0 = arith.constant 0 : i32
    return %arg0, %c0_i32 : i32, i32
  }
}

module attributes {stable_mosaic.version = 11 : i64} {
  func.func @gat_layer2_kernel(%arg0: i32, %arg1: memref<16x32xf32, #tpu.memory_space<vmem>>, %arg2: memref<16x32xf32, #tpu.memory_space<vmem>>, %arg3: memref<16x16xf32, #tpu.memory_space<vmem>>, %arg4: memref<32x32xf32, #tpu.memory_space<vmem>>, %arg5: memref<32x2xf32, #tpu.memory_space<vmem>>, %arg6: memref<32x2xf32, #tpu.memory_space<vmem>>, %arg7: memref<32x128xf32, #tpu.memory_space<vmem>>, %arg8: memref<1x128xf32, #tpu.memory_space<vmem>>, %arg9: memref<16x128xf32, #tpu.memory_space<vmem>>) attributes {dimension_semantics = [#tpu.dimension_semantics<parallel>], iteration_bounds = array<i64: 1>, scalar_prefetch = 0 : i64, scratch_operands = 0 : i64, tpu.core_type = #tpu.core_type<tc>, window_params = [{pipeline_mode = #tpu.pipeline_mode<synchronous>, transform_indices = @transform_0, window_bounds = array<i64: 16, 32>}, {transform_indices = @transform_1, window_bounds = array<i64: 16, 32>}, {transform_indices = @transform_2, window_bounds = array<i64: 16, 16>}, {pipeline_mode = #tpu.pipeline_mode<synchronous>, transform_indices = @transform_3, window_bounds = array<i64: 32, 32>}, {pipeline_mode = #tpu.pipeline_mode<synchronous>, transform_indices = @transform_4, window_bounds = array<i64: 32, 2>}, {pipeline_mode = #tpu.pipeline_mode<synchronous>, transform_indices = @transform_5, window_bounds = array<i64: 32, 2>}, {pipeline_mode = #tpu.pipeline_mode<synchronous>, transform_indices = @transform_6, window_bounds = array<i64: 32, 128>}, {pipeline_mode = #tpu.pipeline_mode<synchronous>, transform_indices = @transform_7, window_bounds = array<i64: 1, 128>}, {transform_indices = @transform_8, window_bounds = array<i64: 16, 128>}]} {
    %c0 = arith.constant 0 : index
    %c0_0 = arith.constant 0 : index
    %0 = vector.load %arg1[%c0, %c0_0] : memref<16x32xf32, #tpu.memory_space<vmem>>, vector<16x32xf32>
    %c0_1 = arith.constant 0 : index
    %c0_2 = arith.constant 0 : index
    %1 = vector.load %arg2[%c0_1, %c0_2] : memref<16x32xf32, #tpu.memory_space<vmem>>, vector<16x32xf32>
    %c0_3 = arith.constant 0 : index
    %c0_4 = arith.constant 0 : index
    %2 = vector.load %arg3[%c0_3, %c0_4] : memref<16x16xf32, #tpu.memory_space<vmem>>, vector<16x16xf32>
    %c0_5 = arith.constant 0 : index
    %c0_6 = arith.constant 0 : index
    %3 = vector.load %arg4[%c0_5, %c0_6] : memref<32x32xf32, #tpu.memory_space<vmem>>, vector<32x32xf32>
    %cst = arith.constant dense<0.000000e+00> : vector<16x32xf32>
    %4 = tpu.matmul %0, %3, %cst {dimension_numbers = #tpu.dot_dimension_numbers<[1], [0], [0], [1], [0, 0, 1, 1], [], []>} : vector<16x32xf32>, vector<32x32xf32>, vector<16x32xf32> -> vector<16x32xf32>
    %c0_7 = arith.constant 0 : index
    %c0_8 = arith.constant 0 : index
    %5 = vector.load %arg6[%c0_7, %c0_8] : memref<32x2xf32, #tpu.memory_space<vmem>>, vector<32x2xf32>
    %cst_9 = arith.constant dense<0.000000e+00> : vector<16x2xf32>
    %6 = tpu.matmul %1, %5, %cst_9 {dimension_numbers = #tpu.dot_dimension_numbers<[1], [0], [0], [1], [0, 0, 1, 1], [], []>} : vector<16x32xf32>, vector<32x2xf32>, vector<16x2xf32> -> vector<16x2xf32>
    %c0_10 = arith.constant 0 : index
    %c0_11 = arith.constant 0 : index
    %7 = vector.load %arg5[%c0_10, %c0_11] : memref<32x2xf32, #tpu.memory_space<vmem>>, vector<32x2xf32>
    %cst_12 = arith.constant dense<0.000000e+00> : vector<2x16xf32>
    %8 = tpu.matmul %7, %0, %cst_12 {dimension_numbers = #tpu.dot_dimension_numbers<[0], [1], [1], [0], [0, 1, 1, 0], [], []>} : vector<32x2xf32>, vector<16x32xf32>, vector<2x16xf32> -> vector<2x16xf32>
    %9 = vector.extract_strided_slice %6 {offsets = [0, 0], sizes = [16, 1], strides = [1, 1]} : vector<16x2xf32> to vector<16x1xf32>
    %10 = vector.extract_strided_slice %8 {offsets = [0, 0], sizes = [1, 16], strides = [1, 1]} : vector<2x16xf32> to vector<1x16xf32>
    %11 = vector.broadcast %9 : vector<16x1xf32> to vector<16x16xf32>
    %12 = vector.broadcast %10 : vector<1x16xf32> to vector<16x16xf32>
    %13 = arith.addf %11, %12 : vector<16x16xf32>
    %cst_13 = arith.constant 0.000000e+00 : f32
    %14 = vector.broadcast %cst_13 : f32 to vector<16x16xf32>
    %15 = arith.cmpf ogt, %13, %14 : vector<16x16xf32>
    %cst_14 = arith.constant 2.000000e-01 : f32
    %16 = vector.broadcast %cst_14 : f32 to vector<16x16xf32>
    %17 = arith.mulf %16, %13 : vector<16x16xf32>
    %18 = arith.select %15, %13, %17 : vector<16x16xi1>, vector<16x16xf32>
    %19 = arith.addf %18, %2 : vector<16x16xf32>
    %cst_15 = arith.constant dense<0xFF800000> : vector<16xf32>
    %20 = vector.multi_reduction <maximumf>, %19, %cst_15 [1] : vector<16x16xf32> to vector<16xf32>
    %21 = vector.shape_cast %20 : vector<16xf32> to vector<16x1xf32>
    %22 = vector.broadcast %21 : vector<16x1xf32> to vector<16x16xf32>
    %23 = arith.subf %19, %22 : vector<16x16xf32>
    %24 = math.exp %23 : vector<16x16xf32>
    %cst_16 = arith.constant dense<0.000000e+00> : vector<16xf32>
    %25 = vector.multi_reduction <add>, %24, %cst_16 [1] : vector<16x16xf32> to vector<16xf32>
    %26 = vector.shape_cast %25 : vector<16xf32> to vector<16x1xf32>
    %cst_17 = arith.constant 1.000000e-30 : f32
    %27 = vector.broadcast %cst_17 : f32 to vector<16x1xf32>
    %28 = arith.maximumf %26, %27 : vector<16x1xf32>
    %29 = tpu.reciprocal %28 {approx = true} : vector<16x1xf32> -> vector<16x1xf32>
    %30 = vector.broadcast %29 : vector<16x1xf32> to vector<16x16xf32>
    %31 = arith.mulf %24, %30 : vector<16x16xf32>
    %32 = vector.extract_strided_slice %4 {offsets = [0, 0], sizes = [16, 16], strides = [1, 1]} : vector<16x32xf32> to vector<16x16xf32>
    %cst_18 = arith.constant dense<0.000000e+00> : vector<16x16xf32>
    %33 = tpu.matmul %31, %32, %cst_18 {dimension_numbers = #tpu.dot_dimension_numbers<[1], [0], [0], [1], [0, 0, 1, 1], [], []>} : vector<16x16xf32>, vector<16x16xf32>, vector<16x16xf32> -> vector<16x16xf32>
    %34 = vector.extract_strided_slice %6 {offsets = [0, 1], sizes = [16, 1], strides = [1, 1]} : vector<16x2xf32> to vector<16x1xf32>
    %35 = vector.extract_strided_slice %8 {offsets = [1, 0], sizes = [1, 16], strides = [1, 1]} : vector<2x16xf32> to vector<1x16xf32>
    %36 = vector.broadcast %34 : vector<16x1xf32> to vector<16x16xf32>
    %37 = vector.broadcast %35 : vector<1x16xf32> to vector<16x16xf32>
    %38 = arith.addf %36, %37 : vector<16x16xf32>
    %cst_19 = arith.constant 0.000000e+00 : f32
    %39 = vector.broadcast %cst_19 : f32 to vector<16x16xf32>
    %40 = arith.cmpf ogt, %38, %39 : vector<16x16xf32>
    %cst_20 = arith.constant 2.000000e-01 : f32
    %41 = vector.broadcast %cst_20 : f32 to vector<16x16xf32>
    %42 = arith.mulf %41, %38 : vector<16x16xf32>
    %43 = arith.select %40, %38, %42 : vector<16x16xi1>, vector<16x16xf32>
    %44 = arith.addf %43, %2 : vector<16x16xf32>
    %cst_21 = arith.constant dense<0xFF800000> : vector<16xf32>
    %45 = vector.multi_reduction <maximumf>, %44, %cst_21 [1] : vector<16x16xf32> to vector<16xf32>
    %46 = vector.shape_cast %45 : vector<16xf32> to vector<16x1xf32>
    %47 = vector.broadcast %46 : vector<16x1xf32> to vector<16x16xf32>
    %48 = arith.subf %44, %47 : vector<16x16xf32>
    %49 = math.exp %48 : vector<16x16xf32>
    %cst_22 = arith.constant dense<0.000000e+00> : vector<16xf32>
    %50 = vector.multi_reduction <add>, %49, %cst_22 [1] : vector<16x16xf32> to vector<16xf32>
    %51 = vector.shape_cast %50 : vector<16xf32> to vector<16x1xf32>
    %cst_23 = arith.constant 1.000000e-30 : f32
    %52 = vector.broadcast %cst_23 : f32 to vector<16x1xf32>
    %53 = arith.maximumf %51, %52 : vector<16x1xf32>
    %54 = tpu.reciprocal %53 {approx = true} : vector<16x1xf32> -> vector<16x1xf32>
    %55 = vector.broadcast %54 : vector<16x1xf32> to vector<16x16xf32>
    %56 = arith.mulf %49, %55 : vector<16x16xf32>
    %57 = vector.extract_strided_slice %4 {offsets = [0, 16], sizes = [16, 16], strides = [1, 1]} : vector<16x32xf32> to vector<16x16xf32>
    %cst_24 = arith.constant dense<0.000000e+00> : vector<16x16xf32>
    %58 = tpu.matmul %56, %57, %cst_24 {dimension_numbers = #tpu.dot_dimension_numbers<[1], [0], [0], [1], [0, 0, 1, 1], [], []>} : vector<16x16xf32>, vector<16x16xf32>, vector<16x16xf32> -> vector<16x16xf32>
    %c0_25 = arith.constant 0 : index
    %c0_26 = arith.constant 0 : index
    %59 = vector.load %arg7[%c0_25, %c0_26] : memref<32x128xf32, #tpu.memory_space<vmem>>, vector<16x128xf32>
    %cst_27 = arith.constant dense<0.000000e+00> : vector<16x128xf32>
    %60 = tpu.matmul %33, %59, %cst_27 {dimension_numbers = #tpu.dot_dimension_numbers<[1], [0], [0], [1], [0, 0, 1, 1], [], []>} : vector<16x16xf32>, vector<16x128xf32>, vector<16x128xf32> -> vector<16x128xf32>
    %c16 = arith.constant 16 : index
    %c0_28 = arith.constant 0 : index
    %61 = vector.load %arg7[%c16, %c0_28] : memref<32x128xf32, #tpu.memory_space<vmem>>, vector<16x128xf32>
    %cst_29 = arith.constant dense<0.000000e+00> : vector<16x128xf32>
    %62 = tpu.matmul %58, %61, %cst_29 {dimension_numbers = #tpu.dot_dimension_numbers<[1], [0], [0], [1], [0, 0, 1, 1], [], []>} : vector<16x16xf32>, vector<16x128xf32>, vector<16x128xf32> -> vector<16x128xf32>
    %63 = arith.addf %60, %62 : vector<16x128xf32>
    %c0_30 = arith.constant 0 : index
    %c0_31 = arith.constant 0 : index
    %64 = vector.load %arg8[%c0_30, %c0_31] : memref<1x128xf32, #tpu.memory_space<vmem>>, vector<1x128xf32>
    %65 = vector.broadcast %64 : vector<1x128xf32> to vector<16x128xf32>
    %66 = arith.addf %63, %65 : vector<16x128xf32>
    %c0_32 = arith.constant 0 : index
    %c0_33 = arith.constant 0 : index
    %67 = vector.load %arg9[%c0_32, %c0_33] : memref<16x128xf32, #tpu.memory_space<vmem>>, vector<16x128xf32>
    tpu.vector_store %arg9[%c0_32, %c0_33], %66 {strides = array<i32>} : memref<16x128xf32, #tpu.memory_space<vmem>>, vector<16x128xf32>,
    return
  }
  func.func @transform_0(%arg0: i32) -> (i32, i32) {
    %c0_i32 = arith.constant 0 : i32
    %c0_i32_0 = arith.constant 0 : i32
    %c0_i32_1 = arith.constant 0 : i32
    return %c0_i32, %c0_i32_0 : i32, i32
  }
  func.func @transform_1(%arg0: i32) -> (i32, i32) {
    %c0_i32 = arith.constant 0 : i32
    %c0_i32_0 = arith.constant 0 : i32
    return %arg0, %c0_i32 : i32, i32
  }
  func.func @transform_2(%arg0: i32) -> (i32, i32) {
    %c0_i32 = arith.constant 0 : i32
    %c0_i32_0 = arith.constant 0 : i32
    return %arg0, %c0_i32 : i32, i32
  }
  func.func @transform_3(%arg0: i32) -> (i32, i32) {
    %c0_i32 = arith.constant 0 : i32
    %c0_i32_0 = arith.constant 0 : i32
    %c0_i32_1 = arith.constant 0 : i32
    return %c0_i32, %c0_i32_0 : i32, i32
  }
  func.func @transform_4(%arg0: i32) -> (i32, i32) {
    %c0_i32 = arith.constant 0 : i32
    %c0_i32_0 = arith.constant 0 : i32
    %c0_i32_1 = arith.constant 0 : i32
    return %c0_i32, %c0_i32_0 : i32, i32
  }
  func.func @transform_5(%arg0: i32) -> (i32, i32) {
    %c0_i32 = arith.constant 0 : i32
    %c0_i32_0 = arith.constant 0 : i32
    %c0_i32_1 = arith.constant 0 : i32
    return %c0_i32, %c0_i32_0 : i32, i32
  }
  func.func @transform_6(%arg0: i32) -> (i32, i32) {
    %c0_i32 = arith.constant 0 : i32
    %c0_i32_0 = arith.constant 0 : i32
    %c0_i32_1 = arith.constant 0 : i32
    return %c0_i32, %c0_i32_0 : i32, i32
  }
  func.func @transform_7(%arg0: i32) -> (i32, i32) {
    %c0_i32 = arith.constant 0 : i32
    %c0_i32_0 = arith.constant 0 : i32
    %c0_i32_1 = arith.constant 0 : i32
    return %c0_i32, %c0_i32_0 : i32, i32
  }
  func.func @transform_8(%arg0: i32) -> (i32, i32) {
    %c0_i32 = arith.constant 0 : i32
    %c0_i32_0 = arith.constant 0 : i32
    return %arg0, %c0_i32 : i32, i32
  }
}

</mosaic_0001>

<llo_original>
// kernel: gat_forward.2
$region0: #{gat_forward.2}
  #allocation0 [shape = 'u32[]', space=smem, size = 0x4, offset = 0x4, fixed_abs, tag = 'smem constant byte address 0x4 - core index']
  #allocation1 [shape = 'u32[144,128]{1,0:T(1,128)}', space=vmem, size = 0x12000, scoped, tag = 'internal scratch']
  %s0 = inlined_call_operand.vmem [shape: f32[16,16], index: 0, kind: input, shape index: {}, may-alias: {0,1}]
  %s1 = inlined_call_operand.vmem [shape: f32[16,16], index: 1, kind: input, shape index: {}, may-alias: {0,1}]
  %s2 = inlined_call_operand.vmem [shape: f32[16,16], index: 2, kind: input, shape index: {}]
  %s3 = inlined_call_operand.vmem [shape: f32[16,32], index: 3, kind: input, shape index: {}]
  %s4 = inlined_call_operand.vmem [shape: f32[16,2], index: 4, kind: input, shape index: {}]
  %s5 = inlined_call_operand.vmem [shape: f32[16,2], index: 5, kind: input, shape index: {}]
  %s6 = inlined_call_operand.vmem [shape: f32[1,32], index: 6, kind: input, shape index: {}]
  %s7 = inlined_call_operand.vmem [shape: f32[16,32], index: 7, kind: output, shape index: {}]
  %s8 = sld [smem:[#allocation0]]
  $region38: #{gat_forward.2} parent=0
    _
  %s10 = ssub.s32 1, %s8
  %s11 = scalar_select 0, %s10, %s8
  // Predicated region
  $region2: #{gat_forward.2} parent=0 // pred_check
    _
  $region3: #{gat_forward.2} parent=0 // pred_check_branch
    %13 = sbr.rel (0) target = $region5
  $region4: #{gat_forward.2} parent=0 // pred_region
    _
  $region5: #{gat_forward.2} parent=0 // pred_fallthru
    _
  // Predicated region
  $region6: #{gat_forward.2} parent=0 // pred_check
    _
  $region7: #{gat_forward.2} parent=0 // pred_check_branch
    %15 = sbr.rel (0) target = $region9
  $region8: #{gat_forward.2} parent=0 // pred_region
    _
  $region9: #{gat_forward.2} parent=0 // pred_fallthru
    _
  // Predicated region
  $region10: #{gat_forward.2} parent=0 // pred_check
    _
  $region11: #{gat_forward.2} parent=0 // pred_check_branch
    %17 = sbr.rel (0) target = $region13
  $region12: #{gat_forward.2} parent=0 // pred_region
    _
  $region13: #{gat_forward.2} parent=0 // pred_fallthru
    _
  // Predicated region
  $region14: #{gat_forward.2} parent=0 // pred_check
    _
  $region15: #{gat_forward.2} parent=0 // pred_check_branch
    %19 = sbr.rel (0) target = $region17
  $region16: #{gat_forward.2} parent=0 // pred_region
    _
  $region17: #{gat_forward.2} parent=0 // pred_fallthru
    _
  // Predicated region
  $region18: #{gat_forward.2} parent=0 // pred_check
    _
  $region19: #{gat_forward.2} parent=0 // pred_check_branch
    %21 = sbr.rel (0) target = $region21
  $region20: #{gat_forward.2} parent=0 // pred_region
    _
  $region21: #{gat_forward.2} parent=0 // pred_fallthru
    _
  // Predicated region
  $region22: #{gat_forward.2} parent=0 // pred_check
    _
  $region23: #{gat_forward.2} parent=0 // pred_check_branch
    %23 = sbr.rel (0) target = $region25
  $region24: #{gat_forward.2} parent=0 // pred_region
    _
  $region25: #{gat_forward.2} parent=0 // pred_fallthru
    _
  // Predicated region
  $region26: #{gat_forward.2} parent=0 // pred_check
    _
  $region27: #{gat_forward.2} parent=0 // pred_check_branch
    %25 = sbr.rel (0) target = $region29
  $region28: #{gat_forward.2} parent=0 // pred_region
    _
  $region29: #{gat_forward.2} parent=0 // pred_fallthru
    _
  %v26 = vld [vmem:[%s0] sm:$0xff]
  %v27 = vld [vmem:[%s0 + $0x8] sm:$0xff]
  %v28 = vld [vmem:[%s1] sm:$0xff]
  %v29 = vld [vmem:[%s1 + $0x8] sm:$0xff]
  %v30 = vld [vmem:[%s2] sm:$0xff]
  %v31 = vld [vmem:[%s2 + $0x8] sm:$0xff]
  %v32 = vld [vmem:[%s3] sm:$0xff]
  %v33 = vld [vmem:[%s3 + $0x8] sm:$0xff]
  %vm34 = vcmask 130048
  %v36 = vsel %vm34, %v26, 0
  %v39 = vsel %vm34, %v27, 0
  %41 = vmatprep.subr.mxu0 0.0
  %42 = vmatpush1.msra.mxu0 %v32
  %43 = vmatprep.subr.mxu0 0.0
  %44 = vmatpush1.msra.mxu0 %v33
  %45 = vmatprep.subr.mxu0 0.0
  %46 = vmatpush1.msra.mxu0 0.0
  %47 = vmatprep.subr.mxu0 0.0
  %48 = vmatpush1.msra.mxu0 0.0
  %49 = vmatprep.subr.mxu0 0.0
  %50 = vmatpush1.msra.mxu0 0.0
  %51 = vmatprep.subr.mxu0 0.0
  %52 = vmatpush1.msra.mxu0 0.0
  %53 = vmatprep.subr.mxu0 0.0
  %54 = vmatpush1.msra.mxu0 0.0
  %55 = vmatprep.subr.mxu0 0.0
  %56 = vmatpush1.msra.mxu0 0.0
  %57 = vmatprep.subr.mxu0 0.0
  %58 = vmatpush1.msra.mxu0 0.0
  %59 = vmatprep.subr.mxu0 0.0
  %60 = vmatpush1.msra.mxu0 0.0
  %61 = vmatprep.subr.mxu0 0.0
  %62 = vmatpush1.msra.mxu0 0.0
  %63 = vmatprep.subr.mxu0 0.0
  %64 = vmatpush1.msra.mxu0 0.0
  %65 = vmatprep.subr.mxu0 0.0
  %66 = vmatpush1.msra.mxu0 0.0
  %67 = vmatprep.subr.mxu0 0.0
  %68 = vmatpush1.msra.mxu0 0.0
  %69 = vmatprep.subr.mxu0 0.0
  %70 = vmatpush1.msra.mxu0 0.0
  %71 = vmatprep.subr.mxu0 0.0
  %72 = vmatpush1.msra.mxu0 0.0
  %73 = vmatprep.subr.mxu0 0.0
  %74 = vmatpush1.msra.mxu0 0.0
  %75 = vmatprep.subr.mxu0 0.0
  %76 = vmatpush1.msra.mxu0 0.0
  %77 = vmatprep.subr.mxu0 0.0
  %78 = vmatpush1.msra.mxu0 0.0
  %79 = vmatprep.subr.mxu0 0.0
  %80 = vmatpush1.msra.mxu0 0.0
  %81 = vmatprep.subr.mxu0 0.0
  %82 = vmatpush1.msra.mxu0 0.0
  %83 = vmatprep.subr.mxu0 0.0
  %84 = vmatpush1.msra.mxu0 0.0
  %85 = vmatprep.subr.mxu0 0.0
  %86 = vmatpush1.msra.mxu0 0.0
  %87 = vmatprep.subr.mxu0 0.0
  %88 = vmatpush1.msra.mxu0 0.0
  %89 = vmatprep.subr.mxu0 0.0
  %90 = vmatpush1.msra.mxu0 0.0
  %91 = vmatprep.subr.mxu0 0.0
  %92 = vmatpush1.msra.mxu0 0.0
  %93 = vmatprep.subr.mxu0 0.0
  %94 = vmatpush1.msra.mxu0 0.0
  %95 = vmatprep.subr.mxu0 0.0
  %96 = vmatpush1.msra.mxu0 0.0
  %97 = vmatprep.subr.mxu0 0.0
  %98 = vmatpush1.msra.mxu0 0.0
  %99 = vmatprep.subr.mxu0 0.0
  %100 = vmatpush1.msra.mxu0 0.0
  %101 = vmatprep.subr.mxu0 0.0
  %102 = vmatpush1.msra.mxu0 0.0
  %103 = vmatprep.subr.mxu0 0.0
  %104 = vmatpush1.msra.mxu0 0.0
  %105 = vmatprep.mubr.f32.mxu0 0.0
  %106 = vmatmul.mubr.f32.gmra.mrb[0].mxu0 %v36
  %v107 = vpop.f32.mrb[0].mxu0
  %v108 = vadd.f32 0.0, %v107
  %v109 = vpop.f32.mrb[0].mxu0
  %110 = vmatprep.mubr.f32.mxu0 0.0
  %111 = vmatmul.mubr.f32.gmra.mrb[0].mxu0 %v39
  %v112 = vpop.f32.mrb[0].mxu0
  %v113 = vadd.f32 0.0, %v112
  %v114 = vpop.f32.mrb[0].mxu0
  %115 = vdwg.mxu0
  %v116 = vld [vmem:[%s5] sm:$0xff]
  %v117 = vld [vmem:[%s5 + $0x8] sm:$0xff]
  %v119 = vsel %vm34, %v28, 0
  %v122 = vsel %vm34, %v29, 0
  %124 = vmatprep.subr.mxu0 0.0
  %125 = vmatpush1.msra.mxu0 %v116
  %126 = vmatprep.subr.mxu0 0.0
  %127 = vmatpush1.msra.mxu0 %v117
  %128 = vmatprep.subr.mxu0 0.0
  %129 = vmatpush1.msra.mxu0 0.0
  %130 = vmatprep.subr.mxu0 0.0
  %131 = vmatpush1.msra.mxu0 0.0
  %132 = vmatprep.subr.mxu0 0.0
  %133 = vmatpush1.msra.mxu0 0.0
  %134 = vmatprep.subr.mxu0 0.0
  %135 = vmatpush1.msra.mxu0 0.0
  %136 = vmatprep.subr.mxu0 0.0
  %137 = vmatpush1.msra.mxu0 0.0
  %138 = vmatprep.subr.mxu0 0.0
  %139 = vmatpush1.msra.mxu0 0.0
  %140 = vmatprep.subr.mxu0 0.0
  %141 = vmatpush1.msra.mxu0 0.0
  %142 = vmatprep.subr.mxu0 0.0
  %143 = vmatpush1.msra.mxu0 0.0
  %144 = vmatprep.subr.mxu0 0.0
  %145 = vmatpush1.msra.mxu0 0.0
  %146 = vmatprep.subr.mxu0 0.0
  %147 = vmatpush1.msra.mxu0 0.0
  %148 = vmatprep.subr.mxu0 0.0
  %149 = vmatpush1.msra.mxu0 0.0
  %150 = vmatprep.subr.mxu0 0.0
  %151 = vmatpush1.msra.mxu0 0.0
  %152 = vmatprep.subr.mxu0 0.0
  %153 = vmatpush1.msra.mxu0 0.0
  %154 = vmatprep.subr.mxu0 0.0
  %155 = vmatpush1.msra.mxu0 0.0
  %156 = vmatprep.subr.mxu0 0.0
  %157 = vmatpush1.msra.mxu0 0.0
  %158 = vmatprep.subr.mxu0 0.0
  %159 = vmatpush1.msra.mxu0 0.0
  %160 = vmatprep.subr.mxu0 0.0
  %161 = vmatpush1.msra.mxu0 0.0
  %162 = vmatprep.subr.mxu0 0.0
  %163 = vmatpush1.msra.mxu0 0.0
  %164 = vmatprep.subr.mxu0 0.0
  %165 = vmatpush1.msra.mxu0 0.0
  %166 = vmatprep.subr.mxu0 0.0
  %167 = vmatpush1.msra.mxu0 0.0
  %168 = vmatprep.subr.mxu0 0.0
  %169 = vmatpush1.msra.mxu0 0.0
  %170 = vmatprep.subr.mxu0 0.0
  %171 = vmatpush1.msra.mxu0 0.0
  %172 = vmatprep.subr.mxu0 0.0
  %173 = vmatpush1.msra.mxu0 0.0
  %174 = vmatprep.subr.mxu0 0.0
  %175 = vmatpush1.msra.mxu0 0.0
  %176 = vmatprep.subr.mxu0 0.0
  %177 = vmatpush1.msra.mxu0 0.0
  %178 = vmatprep.subr.mxu0 0.0
  %179 = vmatpush1.msra.mxu0 0.0
  %180 = vmatprep.subr.mxu0 0.0
  %181 = vmatpush1.msra.mxu0 0.0
  %182 = vmatprep.subr.mxu0 0.0
  %183 = vmatpush1.msra.mxu0 0.0
  %184 = vmatprep.subr.mxu0 0.0
  %185 = vmatpush1.msra.mxu0 0.0
  %186 = vmatprep.subr.mxu0 0.0
  %187 = vmatpush1.msra.mxu0 0.0
  %188 = vmatprep.mubr.f32.mxu0 0.0
  %189 = vmatmul.mubr.f32.gmra.mrb[0].mxu0 %v119
  %v190 = vpop.f32.mrb[0].mxu0
  %v191 = vadd.f32 0.0, %v190
  %v192 = vpop.f32.mrb[0].mxu0
  %193 = vmatprep.mubr.f32.mxu0 0.0
  %194 = vmatmul.mubr.f32.gmra.mrb[0].mxu0 %v122
  %v195 = vpop.f32.mrb[0].mxu0
  %v196 = vadd.f32 0.0, %v195
  %v197 = vpop.f32.mrb[0].mxu0
  %198 = vdwg.mxu0
  %v199 = vld [vmem:[%s4] sm:$0xff]
  %v200 = vld [vmem:[%s4 + $0x8] sm:$0xff]
  %201 = vxpose.xlu0.b32.start [1/16] %v199, 128
  %202 = vxpose.xlu0.b32.cont [2/16] %v200, 128
  %203 = vxpose.xlu0.b32.cont [3/16] 0.0, 128
  %204 = vxpose.xlu0.b32.cont [4/16] 0.0, 128
  %205 = vxpose.xlu0.b32.cont [5/16] 0.0, 128
  %206 = vxpose.xlu0.b32.cont [6/16] 0.0, 128
  %207 = vxpose.xlu0.b32.cont [7/16] 0.0, 128
  %208 = vxpose.xlu0.b32.cont [8/16] 0.0, 128
  %209 = vxpose.xlu0.b32.cont [9/16] 0.0, 128
  %210 = vxpose.xlu0.b32.cont [10/16] 0.0, 128
  %211 = vxpose.xlu0.b32.cont [11/16] 0.0, 128
  %212 = vxpose.xlu0.b32.cont [12/16] 0.0, 128
  %213 = vxpose.xlu0.b32.cont [13/16] 0.0, 128
  %214 = vxpose.xlu0.b32.cont [14/16] 0.0, 128
  %215 = vxpose.xlu0.b32.cont [15/16] 0.0, 128
  %216 = vxpose.xlu0.b32.end [16/16] 0.0, 128
  %v217 = vpop.trf.xlu0
  %v218 = vpop.trf.xlu0
  %v219 = vpop.trf.xlu0
  %v220 = vpop.trf.xlu0
  %v221 = vpop.trf.xlu0
  %v222 = vpop.trf.xlu0
  %v223 = vpop.trf.xlu0
  %v224 = vpop.trf.xlu0
  %v225 = vpop.trf.xlu0
  %v226 = vpop.trf.xlu0
  %v227 = vpop.trf.xlu0
  %v228 = vpop.trf.xlu0
  %v229 = vpop.trf.xlu0
  %v230 = vpop.trf.xlu0
  %v231 = vpop.trf.xlu0
  %v232 = vpop.trf.xlu0
  %v234 = vsel %vm34, %v217, 0
  %236 = vmatprep.subr.mxu0 0.0
  %237 = vmatpush1.xpose.msra.mxu0 %v36
  %238 = vmatprep.subr.mxu0 0.0
  %239 = vmatpush1.xpose.msra.mxu0 %v39
  %240 = vmatprep.subr.mxu0 0.0
  %241 = vmatpush1.xpose.msra.mxu0 0.0
  %242 = vmatprep.subr.mxu0 0.0
  %243 = vmatpush1.xpose.msra.mxu0 0.0
  %244 = vmatprep.subr.mxu0 0.0
  %245 = vmatpush1.xpose.msra.mxu0 0.0
  %246 = vmatprep.subr.mxu0 0.0
  %247 = vmatpush1.xpose.msra.mxu0 0.0
  %248 = vmatprep.subr.mxu0 0.0
  %249 = vmatpush1.xpose.msra.mxu0 0.0
  %250 = vmatprep.subr.mxu0 0.0
  %251 = vmatpush1.xpose.msra.mxu0 0.0
  %252 = vmatprep.subr.mxu0 0.0
  %253 = vmatpush1.xpose.msra.mxu0 0.0
  %254 = vmatprep.subr.mxu0 0.0
  %255 = vmatpush1.xpose.msra.mxu0 0.0
  %256 = vmatprep.subr.mxu0 0.0
  %257 = vmatpush1.xpose.msra.mxu0 0.0
  %258 = vmatprep.subr.mxu0 0.0
  %259 = vmatpush1.xpose.msra.mxu0 0.0
  %260 = vmatprep.subr.mxu0 0.0
  %261 = vmatpush1.xpose.msra.mxu0 0.0
  %262 = vmatprep.subr.mxu0 0.0
  %263 = vmatpush1.xpose.msra.mxu0 0.0
  %264 = vmatprep.subr.mxu0 0.0
  %265 = vmatpush1.xpose.msra.mxu0 0.0
  %266 = vmatprep.subr.mxu0 0.0
  %267 = vmatpush1.xpose.msra.mxu0 0.0
  %268 = vmatprep.subr.mxu0 0.0
  %269 = vmatpush1.xpose.msra.mxu0 0.0
  %270 = vmatprep.subr.mxu0 0.0
  %271 = vmatpush1.xpose.msra.mxu0 0.0
  %272 = vmatprep.subr.mxu0 0.0
  %273 = vmatpush1.xpose.msra.mxu0 0.0
  %274 = vmatprep.subr.mxu0 0.0
  %275 = vmatpush1.xpose.msra.mxu0 0.0
  %276 = vmatprep.subr.mxu0 0.0
  %277 = vmatpush1.xpose.msra.mxu0 0.0
  %278 = vmatprep.subr.mxu0 0.0
  %279 = vmatpush1.xpose.msra.mxu0 0.0
  %280 = vmatprep.subr.mxu0 0.0
  %281 = vmatpush1.xpose.msra.mxu0 0.0
  %282 = vmatprep.subr.mxu0 0.0
  %283 = vmatpush1.xpose.msra.mxu0 0.0
  %284 = vmatprep.subr.mxu0 0.0
  %285 = vmatpush1.xpose.msra.mxu0 0.0
  %286 = vmatprep.subr.mxu0 0.0
  %287 = vmatpush1.xpose.msra.mxu0 0.0
  %288 = vmatprep.subr.mxu0 0.0
  %289 = vmatpush1.xpose.msra.mxu0 0.0
  %290 = vmatprep.subr.mxu0 0.0
  %291 = vmatpush1.xpose.msra.mxu0 0.0
  %292 = vmatprep.subr.mxu0 0.0
  %293 = vmatpush1.xpose.msra.mxu0 0.0
  %294 = vmatprep.subr.mxu0 0.0
  %295 = vmatpush1.xpose.msra.mxu0 0.0
  %296 = vmatprep.subr.mxu0 0.0
  %297 = vmatpush1.xpose.msra.mxu0 0.0
  %298 = vmatprep.subr.mxu0 0.0
  %299 = vmatpush1.xpose.msra.mxu0 0.0
  %300 = vmatprep.mubr.f32.mxu0 0.0
  %301 = vmatmul.mubr.f32.gmra.mrb[0].mxu0 %v234
  %v302 = vpop.f32.mrb[0].mxu0
  %v303 = vadd.f32 0.0, %v302
  %v304 = vpop.f32.mrb[0].mxu0
  %305 = vdwg.mxu0
  %307 = vset.pattern.permute.xlu0 0
  %308 = vperm.xlu0 %307, %v191
  %v309 = vpop.permute.xlu0 %308
  %312 = vset.pattern.permute.xlu0 0
  %313 = vperm.xlu0 %312, %v196
  %v314 = vpop.permute.xlu0 %313
  %v316 = vlaneseq
  %v317 = vshrl.u32 %v316, 7
  %v318 = vsub.s32 0, %v317
  %v319 = vrot.slane %v303, %v318
  %v320 = vadd.f32 %v309, %v319
  %v321 = vadd.f32 %v314, %v319
  %vm322 = vcmp.gt.f32.partialorder %v320, 0.0
  %vm323 = vcmp.gt.f32.partialorder %v321, 0.0
  %v324 = vmul.f32 %v320, 0.2
  %v325 = vmul.f32 %v321, 0.2
  %v326 = vsel %vm322, %v320, %v324
  %v327 = vsel %vm323, %v321, %v325
  %v328 = vadd.f32 %v326, %v30
  %v329 = vadd.f32 %v327, %v31
  %v330 = vsel %vm34, %v328, -inf
  %331 = vmax.xlane.f32.xlu0 %v330
  %v332 = vpop.xlane.xlu0 %331
  %v333 = vsel %vm34, %v329, -inf
  %334 = vmax.xlane.f32.xlu0 %v333
  %v335 = vpop.xlane.xlu0 %334
  %v336 = vsub.f32 %v328, %v332
  %v337 = vsub.f32 %v329, %v335
  %v338 = vmul.f32 %v336, 1.442695
  %v339 = vpow.pop %v338
  %v340 = vmul.f32 %v337, 1.442695
  %v341 = vpow.pop %v340
  %v342 = vsel %vm34, %v339, 0.0
  %343 = vadd.xlane.f32.xlu0 %v342
  %v344 = vpop.xlane.xlu0 %343
  %v345 = vsel %vm34, %v341, 0.0
  %346 = vadd.xlane.f32.xlu0 %v345
  %v347 = vpop.xlane.xlu0 %346
  %v348 = vmax.f32 %v344, 1e-30
  %v349 = vmax.f32 %v347, 1e-30
  %v350 = vrcp.pop %v348
  %v351 = vrcp.pop %v349
  %v352 = vmul.f32 %v339, %v350
  %v353 = vmul.f32 %v341, %v351
  %354 = vset.pattern.permute.xlu0 1
  %355 = vperm.xlu0 %354, %v191
  %v356 = vpop.permute.xlu0 %355
  %358 = vset.pattern.permute.xlu0 1
  %359 = vperm.xlu0 %358, %v196
  %v360 = vpop.permute.xlu0 %359
  %v362 = vlaneseq
  %v363 = vshrl.u32 %v362, 7
  %v364 = vsub.s32 1, %v363
  %v365 = vrot.slane %v303, %v364
  %v366 = vadd.f32 %v356, %v365
  %v367 = vadd.f32 %v360, %v365
  %vm368 = vcmp.gt.f32.partialorder %v366, 0.0
  %vm369 = vcmp.gt.f32.partialorder %v367, 0.0
  %v370 = vmul.f32 %v366, 0.2
  %v371 = vmul.f32 %v367, 0.2
  %v372 = vsel %vm368, %v366, %v370
  %v373 = vsel %vm369, %v367, %v371
  %v374 = vadd.f32 %v372, %v30
  %v375 = vadd.f32 %v373, %v31
  %v376 = vsel %vm34, %v374, -inf
  %377 = vmax.xlane.f32.xlu0 %v376
  %v378 = vpop.xlane.xlu0 %377
  %v379 = vsel %vm34, %v375, -inf
  %380 = vmax.xlane.f32.xlu0 %v379
  %v381 = vpop.xlane.xlu0 %380
  %v382 = vsub.f32 %v374, %v378
  %v383 = vsub.f32 %v375, %v381
  %v384 = vmul.f32 %v382, 1.442695
  %v385 = vpow.pop %v384
  %v386 = vmul.f32 %v383, 1.442695
  %v387 = vpow.pop %v386
  %v388 = vsel %vm34, %v385, 0.0
  %389 = vadd.xlane.f32.xlu0 %v388
  %v390 = vpop.xlane.xlu0 %389
  %v391 = vsel %vm34, %v387, 0.0
  %392 = vadd.xlane.f32.xlu0 %v391
  %v393 = vpop.xlane.xlu0 %392
  %v394 = vmax.f32 %v390, 1e-30
  %v395 = vmax.f32 %v393, 1e-30
  %v396 = vrcp.pop %v394
  %v397 = vrcp.pop %v395
  %v398 = vmul.f32 %v385, %v396
  %v399 = vmul.f32 %v387, %v397
  %v400 = vld [vmem:[%s6] sm:$0x1]
  %v402 = vlaneseq
  %v403 = vshrl.u32 %v402, 7
  %v404 = vsub.s32 0, %v403
  %v405 = vrot.slane %v400, %v404
  %v408 = vsel %vm34, %v352, 0
  %v411 = vsel %vm34, %v353, 0
  %413 = vmatprep.subr.mxu0 0.0
  %414 = vmatpush1.msra.mxu0 %v108
  %415 = vmatprep.subr.mxu0 0.0
  %416 = vmatpush1.msra.mxu0 %v113
  %417 = vmatprep.subr.mxu0 0.0
  %418 = vmatpush1.msra.mxu0 0.0
  %419 = vmatprep.subr.mxu0 0.0
  %420 = vmatpush1.msra.mxu0 0.0
  %421 = vmatprep.subr.mxu0 0.0
  %422 = vmatpush1.msra.mxu0 0.0
  %423 = vmatprep.subr.mxu0 0.0
  %424 = vmatpush1.msra.mxu0 0.0
  %425 = vmatprep.subr.mxu0 0.0
  %426 = vmatpush1.msra.mxu0 0.0
  %427 = vmatprep.subr.mxu0 0.0
  %428 = vmatpush1.msra.mxu0 0.0
  %429 = vmatprep.subr.mxu0 0.0
  %430 = vmatpush1.msra.mxu0 0.0
  %431 = vmatprep.subr.mxu0 0.0
  %432 = vmatpush1.msra.mxu0 0.0
  %433 = vmatprep.subr.mxu0 0.0
  %434 = vmatpush1.msra.mxu0 0.0
  %435 = vmatprep.subr.mxu0 0.0
  %436 = vmatpush1.msra.mxu0 0.0
  %437 = vmatprep.subr.mxu0 0.0
  %438 = vmatpush1.msra.mxu0 0.0
  %439 = vmatprep.subr.mxu0 0.0
  %440 = vmatpush1.msra.mxu0 0.0
  %441 = vmatprep.subr.mxu0 0.0
  %442 = vmatpush1.msra.mxu0 0.0
  %443 = vmatprep.subr.mxu0 0.0
  %444 = vmatpush1.msra.mxu0 0.0
  %445 = vmatprep.subr.mxu0 0.0
  %446 = vmatpush1.msra.mxu0 0.0
  %447 = vmatprep.subr.mxu0 0.0
  %448 = vmatpush1.msra.mxu0 0.0
  %449 = vmatprep.subr.mxu0 0.0
  %450 = vmatpush1.msra.mxu0 0.0
  %451 = vmatprep.subr.mxu0 0.0
  %452 = vmatpush1.msra.mxu0 0.0
  %453 = vmatprep.subr.mxu0 0.0
  %454 = vmatpush1.msra.mxu0 0.0
  %455 = vmatprep.subr.mxu0 0.0
  %456 = vmatpush1.msra.mxu0 0.0
  %457 = vmatprep.subr.mxu0 0.0
  %458 = vmatpush1.msra.mxu0 0.0
  %459 = vmatprep.subr.mxu0 0.0
  %460 = vmatpush1.msra.mxu0 0.0
  %461 = vmatprep.subr.mxu0 0.0
  %462 = vmatpush1.msra.mxu0 0.0
  %463 = vmatprep.subr.mxu0 0.0
  %464 = vmatpush1.msra.mxu0 0.0
  %465 = vmatprep.subr.mxu0 0.0
  %466 = vmatpush1.msra.mxu0 0.0
  %467 = vmatprep.subr.mxu0 0.0
  %468 = vmatpush1.msra.mxu0 0.0
  %469 = vmatprep.subr.mxu0 0.0
  %470 = vmatpush1.msra.mxu0 0.0
  %471 = vmatprep.subr.mxu0 0.0
  %472 = vmatpush1.msra.mxu0 0.0
  %473 = vmatprep.subr.mxu0 0.0
  %474 = vmatpush1.msra.mxu0 0.0
  %475 = vmatprep.subr.mxu0 0.0
  %476 = vmatpush1.msra.mxu0 0.0
  %477 = vmatprep.mubr.f32.mxu0 0.0
  %478 = vmatmul.mubr.f32.gmra.mrb[0].mxu0 %v408
  %v479 = vpop.f32.mrb[0].mxu0
  %v480 = vadd.f32 %v405, %v479
  %v481 = vpop.f32.mrb[0].mxu0
  %482 = vmatprep.mubr.f32.mxu0 0.0
  %483 = vmatmul.mubr.f32.gmra.mrb[0].mxu0 %v411
  %v484 = vpop.f32.mrb[0].mxu0
  %v485 = vadd.f32 %v405, %v484
  %v486 = vpop.f32.mrb[0].mxu0
  %487 = vdwg.mxu0
  %v488 = vmax.f32 %v480, 0.0
  %v489 = vmax.f32 %v485, 0.0
  %490 = vst.msk [vmem:[%s7] sm:$0xff] %vm34, %v488
  %491 = vst.msk [vmem:[%s7 + $0x8] sm:$0xff] %vm34, %v489
  %494 = vrot.lane.b32.xlu0 %v108, 112
  %v495 = vpop.permute.xlu0 %494
  %496 = vrot.lane.b32.xlu0 %v113, 112
  %v497 = vpop.permute.xlu0 %496
  %500 = vrot.lane.b32.xlu0 %v405, 112
  %v501 = vpop.permute.xlu0 %500
  %v504 = vsel %vm34, %v398, 0
  %v507 = vsel %vm34, %v399, 0
  %509 = vmatprep.subr.mxu0 0.0
  %510 = vmatpush1.msra.mxu0 %v495
  %511 = vmatprep.subr.mxu0 0.0
  %512 = vmatpush1.msra.mxu0 %v497
  %513 = vmatprep.subr.mxu0 0.0
  %514 = vmatpush1.msra.mxu0 0.0
  %515 = vmatprep.subr.mxu0 0.0
  %516 = vmatpush1.msra.mxu0 0.0
  %517 = vmatprep.subr.mxu0 0.0
  %518 = vmatpush1.msra.mxu0 0.0
  %519 = vmatprep.subr.mxu0 0.0
  %520 = vmatpush1.msra.mxu0 0.0
  %521 = vmatprep.subr.mxu0 0.0
  %522 = vmatpush1.msra.mxu0 0.0
  %523 = vmatprep.subr.mxu0 0.0
  %524 = vmatpush1.msra.mxu0 0.0
  %525 = vmatprep.subr.mxu0 0.0
  %526 = vmatpush1.msra.mxu0 0.0
  %527 = vmatprep.subr.mxu0 0.0
  %528 = vmatpush1.msra.mxu0 0.0
  %529 = vmatprep.subr.mxu0 0.0
  %530 = vmatpush1.msra.mxu0 0.0
  %531 = vmatprep.subr.mxu0 0.0
  %532 = vmatpush1.msra.mxu0 0.0
  %533 = vmatprep.subr.mxu0 0.0
  %534 = vmatpush1.msra.mxu0 0.0
  %535 = vmatprep.subr.mxu0 0.0
  %536 = vmatpush1.msra.mxu0 0.0
  %537 = vmatprep.subr.mxu0 0.0
  %538 = vmatpush1.msra.mxu0 0.0
  %539 = vmatprep.subr.mxu0 0.0
  %540 = vmatpush1.msra.mxu0 0.0
  %541 = vmatprep.subr.mxu0 0.0
  %542 = vmatpush1.msra.mxu0 0.0
  %543 = vmatprep.subr.mxu0 0.0
  %544 = vmatpush1.msra.mxu0 0.0
  %545 = vmatprep.subr.mxu0 0.0
  %546 = vmatpush1.msra.mxu0 0.0
  %547 = vmatprep.subr.mxu0 0.0
  %548 = vmatpush1.msra.mxu0 0.0
  %549 = vmatprep.subr.mxu0 0.0
  %550 = vmatpush1.msra.mxu0 0.0
  %551 = vmatprep.subr.mxu0 0.0
  %552 = vmatpush1.msra.mxu0 0.0
  %553 = vmatprep.subr.mxu0 0.0
  %554 = vmatpush1.msra.mxu0 0.0
  %555 = vmatprep.subr.mxu0 0.0
  %556 = vmatpush1.msra.mxu0 0.0
  %557 = vmatprep.subr.mxu0 0.0
  %558 = vmatpush1.msra.mxu0 0.0
  %559 = vmatprep.subr.mxu0 0.0
  %560 = vmatpush1.msra.mxu0 0.0
  %561 = vmatprep.subr.mxu0 0.0
  %562 = vmatpush1.msra.mxu0 0.0
  %563 = vmatprep.subr.mxu0 0.0
  %564 = vmatpush1.msra.mxu0 0.0
  %565 = vmatprep.subr.mxu0 0.0
  %566 = vmatpush1.msra.mxu0 0.0
  %567 = vmatprep.subr.mxu0 0.0
  %568 = vmatpush1.msra.mxu0 0.0
  %569 = vmatprep.subr.mxu0 0.0
  %570 = vmatpush1.msra.mxu0 0.0
  %571 = vmatprep.subr.mxu0 0.0
  %572 = vmatpush1.msra.mxu0 0.0
  %573 = vmatprep.mubr.f32.mxu0 0.0
  %574 = vmatmul.mubr.f32.gmra.mrb[0].mxu0 %v504
  %v575 = vpop.f32.mrb[0].mxu0
  %v576 = vadd.f32 %v501, %v575
  %v577 = vpop.f32.mrb[0].mxu0
  %578 = vmatprep.mubr.f32.mxu0 0.0
  %579 = vmatmul.mubr.f32.gmra.mrb[0].mxu0 %v507
  %v580 = vpop.f32.mrb[0].mxu0
  %v581 = vadd.f32 %v501, %v580
  %v582 = vpop.f32.mrb[0].mxu0
  %583 = vdwg.mxu0
  %v584 = vmax.f32 %v576, 0.0
  %v585 = vmax.f32 %v581, 0.0
  %588 = vrot.lane.b32.xlu0 %v584, 16
  %v589 = vpop.permute.xlu0 %588
  %590 = vrot.lane.b32.xlu0 %v585, 16
  %v591 = vpop.permute.xlu0 %590
  %vm594 = vcmask 261248
  %595 = vst.msk [vmem:[%s7] sm:$0xff] %vm594, %v589
  %596 = vst.msk [vmem:[%s7 + $0x8] sm:$0xff] %vm594, %v591
  // Predicated region
  $region30: #{gat_forward.2} parent=0 // pred_check
    _
  $region31: #{gat_forward.2} parent=0 // pred_check_branch
    %598 = sbr.rel (0) target = $region33
  $region32: #{gat_forward.2} parent=0 // pred_region
    _
  $region33: #{gat_forward.2} parent=0 // pred_fallthru
    _
  // Predicated region
  $region34: #{gat_forward.2} parent=0 // pred_check
    _
  $region35: #{gat_forward.2} parent=0 // pred_check_branch
    %600 = sbr.rel (0) target = $region37
  $region36: #{gat_forward.2} parent=0 // pred_region
    _
  $region37: #{gat_forward.2} parent=0 // pred_fallthru
    _

// kernel: gat_forward.3
$region0: #{gat_forward.3}
  #allocation0 [shape = 'u32[]', space=smem, size = 0x4, offset = 0x4, fixed_abs, tag = 'smem constant byte address 0x4 - core index']
  #allocation1 [shape = 'u32[144,128]{1,0:T(1,128)}', space=vmem, size = 0x12000, scoped, tag = 'internal scratch']
  %s0 = inlined_call_operand.vmem [shape: f32[16,32], index: 0, kind: input, shape index: {}, may-alias: {0,1}]
  %s1 = inlined_call_operand.vmem [shape: f32[16,32], index: 1, kind: input, shape index: {}, may-alias: {0,1}]
  %s2 = inlined_call_operand.vmem [shape: f32[16,16], index: 2, kind: input, shape index: {}]
  %s3 = inlined_call_operand.vmem [shape: f32[32,32], index: 3, kind: input, shape index: {}]
  %s4 = inlined_call_operand.vmem [shape: f32[32,2], index: 4, kind: input, shape index: {}]
  %s5 = inlined_call_operand.vmem [shape: f32[32,2], index: 5, kind: input, shape index: {}]
  %s6 = inlined_call_operand.vmem [shape: f32[32,128], index: 6, kind: input, shape index: {}]
  %s7 = inlined_call_operand.vmem [shape: f32[1,128], index: 7, kind: input, shape index: {}]
  %s8 = inlined_call_operand.vmem [shape: f32[16,128], index: 8, kind: output, shape index: {}]
  %s9 = sld [smem:[#allocation0]]
  $region42: #{gat_forward.3} parent=0
    _
  %s11 = ssub.s32 1, %s9
  %s12 = scalar_select 0, %s11, %s9
  // Predicated region
  $region2: #{gat_forward.3} parent=0 // pred_check
    _
  $region3: #{gat_forward.3} parent=0 // pred_check_branch
    %14 = sbr.rel (0) target = $region5
  $region4: #{gat_forward.3} parent=0 // pred_region
    _
  $region5: #{gat_forward.3} parent=0 // pred_fallthru
    _
  // Predicated region
  $region6: #{gat_forward.3} parent=0 // pred_check
    _
  $region7: #{gat_forward.3} parent=0 // pred_check_branch
    %16 = sbr.rel (0) target = $region9
  $region8: #{gat_forward.3} parent=0 // pred_region
    _
  $region9: #{gat_forward.3} parent=0 // pred_fallthru
    _
  // Predicated region
  $region10: #{gat_forward.3} parent=0 // pred_check
    _
  $region11: #{gat_forward.3} parent=0 // pred_check_branch
    %18 = sbr.rel (0) target = $region13
  $region12: #{gat_forward.3} parent=0 // pred_region
    _
  $region13: #{gat_forward.3} parent=0 // pred_fallthru
    _
  // Predicated region
  $region14: #{gat_forward.3} parent=0 // pred_check
    _
  $region15: #{gat_forward.3} parent=0 // pred_check_branch
    %20 = sbr.rel (0) target = $region17
  $region16: #{gat_forward.3} parent=0 // pred_region
    _
  $region17: #{gat_forward.3} parent=0 // pred_fallthru
    _
  // Predicated region
  $region18: #{gat_forward.3} parent=0 // pred_check
    _
  $region19: #{gat_forward.3} parent=0 // pred_check_branch
    %22 = sbr.rel (0) target = $region21
  $region20: #{gat_forward.3} parent=0 // pred_region
    _
  $region21: #{gat_forward.3} parent=0 // pred_fallthru
    _
  // Predicated region
  $region22: #{gat_forward.3} parent=0 // pred_check
    _
  $region23: #{gat_forward.3} parent=0 // pred_check_branch
    %24 = sbr.rel (0) target = $region25
  $region24: #{gat_forward.3} parent=0 // pred_region
    _
  $region25: #{gat_forward.3} parent=0 // pred_fallthru
    _
  // Predicated region
  $region26: #{gat_forward.3} parent=0 // pred_check
    _
  $region27: #{gat_forward.3} parent=0 // pred_check_branch
    %26 = sbr.rel (0) target = $region29
  $region28: #{gat_forward.3} parent=0 // pred_region
    _
  $region29: #{gat_forward.3} parent=0 // pred_fallthru
    _
  // Predicated region
  $region30: #{gat_forward.3} parent=0 // pred_check
    _
  $region31: #{gat_forward.3} parent=0 // pred_check_branch
    %28 = sbr.rel (0) target = $region33
  $region32: #{gat_forward.3} parent=0 // pred_region
    _
  $region33: #{gat_forward.3} parent=0 // pred_fallthru
    _
  %v29 = vld [vmem:[%s0] sm:$0xff]
  %v30 = vld [vmem:[%s0 + $0x8] sm:$0xff]
  %v31 = vld [vmem:[%s1] sm:$0xff]
  %v32 = vld [vmem:[%s1 + $0x8] sm:$0xff]
  %v33 = vld [vmem:[%s2] sm:$0xff]
  %v34 = vld [vmem:[%s2 + $0x8] sm:$0xff]
  %v35 = vld [vmem:[%s3] sm:$0xff]
  %v36 = vld [vmem:[%s3 + $0x8] sm:$0xff]
  %v37 = vld [vmem:[%s3 + $0x10] sm:$0xff]
  %v38 = vld [vmem:[%s3 + $0x18] sm:$0xff]
  %vm39 = vcmask 261120
  %v41 = vsel %vm39, %v29, 0
  %v44 = vsel %vm39, %v30, 0
  %46 = vmatprep.subr.mxu0 0.0
  %47 = vmatpush1.msra.mxu0 %v35
  %48 = vmatprep.subr.mxu0 0.0
  %49 = vmatpush1.msra.mxu0 %v36
  %50 = vmatprep.subr.mxu0 0.0
  %51 = vmatpush1.msra.mxu0 %v37
  %52 = vmatprep.subr.mxu0 0.0
  %53 = vmatpush1.msra.mxu0 %v38
  %54 = vmatprep.subr.mxu0 0.0
  %55 = vmatpush1.msra.mxu0 0.0
  %56 = vmatprep.subr.mxu0 0.0
  %57 = vmatpush1.msra.mxu0 0.0
  %58 = vmatprep.subr.mxu0 0.0
  %59 = vmatpush1.msra.mxu0 0.0
  %60 = vmatprep.subr.mxu0 0.0
  %61 = vmatpush1.msra.mxu0 0.0
  %62 = vmatprep.subr.mxu0 0.0
  %63 = vmatpush1.msra.mxu0 0.0
  %64 = vmatprep.subr.mxu0 0.0
  %65 = vmatpush1.msra.mxu0 0.0
  %66 = vmatprep.subr.mxu0 0.0
  %67 = vmatpush1.msra.mxu0 0.0
  %68 = vmatprep.subr.mxu0 0.0
  %69 = vmatpush1.msra.mxu0 0.0
  %70 = vmatprep.subr.mxu0 0.0
  %71 = vmatpush1.msra.mxu0 0.0
  %72 = vmatprep.subr.mxu0 0.0
  %73 = vmatpush1.msra.mxu0 0.0
  %74 = vmatprep.subr.mxu0 0.0
  %75 = vmatpush1.msra.mxu0 0.0
  %76 = vmatprep.subr.mxu0 0.0
  %77 = vmatpush1.msra.mxu0 0.0
  %78 = vmatprep.subr.mxu0 0.0
  %79 = vmatpush1.msra.mxu0 0.0
  %80 = vmatprep.subr.mxu0 0.0
  %81 = vmatpush1.msra.mxu0 0.0
  %82 = vmatprep.subr.mxu0 0.0
  %83 = vmatpush1.msra.mxu0 0.0
  %84 = vmatprep.subr.mxu0 0.0
  %85 = vmatpush1.msra.mxu0 0.0
  %86 = vmatprep.subr.mxu0 0.0
  %87 = vmatpush1.msra.mxu0 0.0
  %88 = vmatprep.subr.mxu0 0.0
  %89 = vmatpush1.msra.mxu0 0.0
  %90 = vmatprep.subr.mxu0 0.0
  %91 = vmatpush1.msra.mxu0 0.0
  %92 = vmatprep.subr.mxu0 0.0
  %93 = vmatpush1.msra.mxu0 0.0
  %94 = vmatprep.subr.mxu0 0.0
  %95 = vmatpush1.msra.mxu0 0.0
  %96 = vmatprep.subr.mxu0 0.0
  %97 = vmatpush1.msra.mxu0 0.0
  %98 = vmatprep.subr.mxu0 0.0
  %99 = vmatpush1.msra.mxu0 0.0
  %100 = vmatprep.subr.mxu0 0.0
  %101 = vmatpush1.msra.mxu0 0.0
  %102 = vmatprep.subr.mxu0 0.0
  %103 = vmatpush1.msra.mxu0 0.0
  %104 = vmatprep.subr.mxu0 0.0
  %105 = vmatpush1.msra.mxu0 0.0
  %106 = vmatprep.subr.mxu0 0.0
  %107 = vmatpush1.msra.mxu0 0.0
  %108 = vmatprep.subr.mxu0 0.0
  %109 = vmatpush1.msra.mxu0 0.0
  %110 = vmatprep.mubr.f32.mxu0 0.0
  %111 = vmatmul.mubr.f32.gmra.mrb[0].mxu0 %v41
  %v112 = vpop.f32.mrb[0].mxu0
  %v113 = vadd.f32 0.0, %v112
  %v114 = vpop.f32.mrb[0].mxu0
  %115 = vmatprep.mubr.f32.mxu0 0.0
  %116 = vmatmul.mubr.f32.gmra.mrb[0].mxu0 %v44
  %v117 = vpop.f32.mrb[0].mxu0
  %v118 = vadd.f32 0.0, %v117
  %v119 = vpop.f32.mrb[0].mxu0
  %120 = vdwg.mxu0
  %v121 = vld [vmem:[%s5] sm:$0xff]
  %v122 = vld [vmem:[%s5 + $0x8] sm:$0xff]
  %v123 = vld [vmem:[%s5 + $0x10] sm:$0xff]
  %v124 = vld [vmem:[%s5 + $0x18] sm:$0xff]
  %v126 = vsel %vm39, %v31, 0
  %v129 = vsel %vm39, %v32, 0
  %131 = vmatprep.subr.mxu0 0.0
  %132 = vmatpush1.msra.mxu0 %v121
  %133 = vmatprep.subr.mxu0 0.0
  %134 = vmatpush1.msra.mxu0 %v122
  %135 = vmatprep.subr.mxu0 0.0
  %136 = vmatpush1.msra.mxu0 %v123
  %137 = vmatprep.subr.mxu0 0.0
  %138 = vmatpush1.msra.mxu0 %v124
  %139 = vmatprep.subr.mxu0 0.0
  %140 = vmatpush1.msra.mxu0 0.0
  %141 = vmatprep.subr.mxu0 0.0
  %142 = vmatpush1.msra.mxu0 0.0
  %143 = vmatprep.subr.mxu0 0.0
  %144 = vmatpush1.msra.mxu0 0.0
  %145 = vmatprep.subr.mxu0 0.0
  %146 = vmatpush1.msra.mxu0 0.0
  %147 = vmatprep.subr.mxu0 0.0
  %148 = vmatpush1.msra.mxu0 0.0
  %149 = vmatprep.subr.mxu0 0.0
  %150 = vmatpush1.msra.mxu0 0.0
  %151 = vmatprep.subr.mxu0 0.0
  %152 = vmatpush1.msra.mxu0 0.0
  %153 = vmatprep.subr.mxu0 0.0
  %154 = vmatpush1.msra.mxu0 0.0
  %155 = vmatprep.subr.mxu0 0.0
  %156 = vmatpush1.msra.mxu0 0.0
  %157 = vmatprep.subr.mxu0 0.0
  %158 = vmatpush1.msra.mxu0 0.0
  %159 = vmatprep.subr.mxu0 0.0
  %160 = vmatpush1.msra.mxu0 0.0
  %161 = vmatprep.subr.mxu0 0.0
  %162 = vmatpush1.msra.mxu0 0.0
  %163 = vmatprep.subr.mxu0 0.0
  %164 = vmatpush1.msra.mxu0 0.0
  %165 = vmatprep.subr.mxu0 0.0
  %166 = vmatpush1.msra.mxu0 0.0
  %167 = vmatprep.subr.mxu0 0.0
  %168 = vmatpush1.msra.mxu0 0.0
  %169 = vmatprep.subr.mxu0 0.0
  %170 = vmatpush1.msra.mxu0 0.0
  %171 = vmatprep.subr.mxu0 0.0
  %172 = vmatpush1.msra.mxu0 0.0
  %173 = vmatprep.subr.mxu0 0.0
  %174 = vmatpush1.msra.mxu0 0.0
  %175 = vmatprep.subr.mxu0 0.0
  %176 = vmatpush1.msra.mxu0 0.0
  %177 = vmatprep.subr.mxu0 0.0
  %178 = vmatpush1.msra.mxu0 0.0
  %179 = vmatprep.subr.mxu0 0.0
  %180 = vmatpush1.msra.mxu0 0.0
  %181 = vmatprep.subr.mxu0 0.0
  %182 = vmatpush1.msra.mxu0 0.0
  %183 = vmatprep.subr.mxu0 0.0
  %184 = vmatpush1.msra.mxu0 0.0
  %185 = vmatprep.subr.mxu0 0.0
  %186 = vmatpush1.msra.mxu0 0.0
  %187 = vmatprep.subr.mxu0 0.0
  %188 = vmatpush1.msra.mxu0 0.0
  %189 = vmatprep.subr.mxu0 0.0
  %190 = vmatpush1.msra.mxu0 0.0
  %191 = vmatprep.subr.mxu0 0.0
  %192 = vmatpush1.msra.mxu0 0.0
  %193 = vmatprep.subr.mxu0 0.0
  %194 = vmatpush1.msra.mxu0 0.0
  %195 = vmatprep.mubr.f32.mxu0 0.0
  %196 = vmatmul.mubr.f32.gmra.mrb[0].mxu0 %v126
  %v197 = vpop.f32.mrb[0].mxu0
  %v198 = vadd.f32 0.0, %v197
  %v199 = vpop.f32.mrb[0].mxu0
  %200 = vmatprep.mubr.f32.mxu0 0.0
  %201 = vmatmul.mubr.f32.gmra.mrb[0].mxu0 %v129
  %v202 = vpop.f32.mrb[0].mxu0
  %v203 = vadd.f32 0.0, %v202
  %v204 = vpop.f32.mrb[0].mxu0
  %205 = vdwg.mxu0
  %v206 = vld [vmem:[%s4] sm:$0xff]
  %v207 = vld [vmem:[%s4 + $0x8] sm:$0xff]
  %v208 = vld [vmem:[%s4 + $0x10] sm:$0xff]
  %v209 = vld [vmem:[%s4 + $0x18] sm:$0xff]
  %210 = vxpose.xlu0.b32.start [1/16] %v206, 128
  %211 = vxpose.xlu0.b32.cont [2/16] %v207, 128
  %212 = vxpose.xlu0.b32.cont [3/16] %v208, 128
  %213 = vxpose.xlu0.b32.cont [4/16] %v209, 128
  %214 = vxpose.xlu0.b32.cont [5/16] 0.0, 128
  %215 = vxpose.xlu0.b32.cont [6/16] 0.0, 128
  %216 = vxpose.xlu0.b32.cont [7/16] 0.0, 128
  %217 = vxpose.xlu0.b32.cont [8/16] 0.0, 128
  %218 = vxpose.xlu0.b32.cont [9/16] 0.0, 128
  %219 = vxpose.xlu0.b32.cont [10/16] 0.0, 128
  %220 = vxpose.xlu0.b32.cont [11/16] 0.0, 128
  %221 = vxpose.xlu0.b32.cont [12/16] 0.0, 128
  %222 = vxpose.xlu0.b32.cont [13/16] 0.0, 128
  %223 = vxpose.xlu0.b32.cont [14/16] 0.0, 128
  %224 = vxpose.xlu0.b32.cont [15/16] 0.0, 128
  %225 = vxpose.xlu0.b32.end [16/16] 0.0, 128
  %v226 = vpop.trf.xlu0
  %v227 = vpop.trf.xlu0
  %v228 = vpop.trf.xlu0
  %v229 = vpop.trf.xlu0
  %v230 = vpop.trf.xlu0
  %v231 = vpop.trf.xlu0
  %v232 = vpop.trf.xlu0
  %v233 = vpop.trf.xlu0
  %v234 = vpop.trf.xlu0
  %v235 = vpop.trf.xlu0
  %v236 = vpop.trf.xlu0
  %v237 = vpop.trf.xlu0
  %v238 = vpop.trf.xlu0
  %v239 = vpop.trf.xlu0
  %v240 = vpop.trf.xlu0
  %v241 = vpop.trf.xlu0
  %v243 = vsel %vm39, %v226, 0
  %245 = vmatprep.subr.mxu0 0.0
  %246 = vmatpush1.xpose.msra.mxu0 %v41
  %247 = vmatprep.subr.mxu0 0.0
  %248 = vmatpush1.xpose.msra.mxu0 %v44
  %249 = vmatprep.subr.mxu0 0.0
  %250 = vmatpush1.xpose.msra.mxu0 0.0
  %251 = vmatprep.subr.mxu0 0.0
  %252 = vmatpush1.xpose.msra.mxu0 0.0
  %253 = vmatprep.subr.mxu0 0.0
  %254 = vmatpush1.xpose.msra.mxu0 0.0
  %255 = vmatprep.subr.mxu0 0.0
  %256 = vmatpush1.xpose.msra.mxu0 0.0
  %257 = vmatprep.subr.mxu0 0.0
  %258 = vmatpush1.xpose.msra.mxu0 0.0
  %259 = vmatprep.subr.mxu0 0.0
  %260 = vmatpush1.xpose.msra.mxu0 0.0
  %261 = vmatprep.subr.mxu0 0.0
  %262 = vmatpush1.xpose.msra.mxu0 0.0
  %263 = vmatprep.subr.mxu0 0.0
  %264 = vmatpush1.xpose.msra.mxu0 0.0
  %265 = vmatprep.subr.mxu0 0.0
  %266 = vmatpush1.xpose.msra.mxu0 0.0
  %267 = vmatprep.subr.mxu0 0.0
  %268 = vmatpush1.xpose.msra.mxu0 0.0
  %269 = vmatprep.subr.mxu0 0.0
  %270 = vmatpush1.xpose.msra.mxu0 0.0
  %271 = vmatprep.subr.mxu0 0.0
  %272 = vmatpush1.xpose.msra.mxu0 0.0
  %273 = vmatprep.subr.mxu0 0.0
  %274 = vmatpush1.xpose.msra.mxu0 0.0
  %275 = vmatprep.subr.mxu0 0.0
  %276 = vmatpush1.xpose.msra.mxu0 0.0
  %277 = vmatprep.subr.mxu0 0.0
  %278 = vmatpush1.xpose.msra.mxu0 0.0
  %279 = vmatprep.subr.mxu0 0.0
  %280 = vmatpush1.xpose.msra.mxu0 0.0
  %281 = vmatprep.subr.mxu0 0.0
  %282 = vmatpush1.xpose.msra.mxu0 0.0
  %283 = vmatprep.subr.mxu0 0.0
  %284 = vmatpush1.xpose.msra.mxu0 0.0
  %285 = vmatprep.subr.mxu0 0.0
  %286 = vmatpush1.xpose.msra.mxu0 0.0
  %287 = vmatprep.subr.mxu0 0.0
  %288 = vmatpush1.xpose.msra.mxu0 0.0
  %289 = vmatprep.subr.mxu0 0.0
  %290 = vmatpush1.xpose.msra.mxu0 0.0
  %291 = vmatprep.subr.mxu0 0.0
  %292 = vmatpush1.xpose.msra.mxu0 0.0
  %293 = vmatprep.subr.mxu0 0.0
  %294 = vmatpush1.xpose.msra.mxu0 0.0
  %295 = vmatprep.subr.mxu0 0.0
  %296 = vmatpush1.xpose.msra.mxu0 0.0
  %297 = vmatprep.subr.mxu0 0.0
  %298 = vmatpush1.xpose.msra.mxu0 0.0
  %299 = vmatprep.subr.mxu0 0.0
  %300 = vmatpush1.xpose.msra.mxu0 0.0
  %301 = vmatprep.subr.mxu0 0.0
  %302 = vmatpush1.xpose.msra.mxu0 0.0
  %303 = vmatprep.subr.mxu0 0.0
  %304 = vmatpush1.xpose.msra.mxu0 0.0
  %305 = vmatprep.subr.mxu0 0.0
  %306 = vmatpush1.xpose.msra.mxu0 0.0
  %307 = vmatprep.subr.mxu0 0.0
  %308 = vmatpush1.xpose.msra.mxu0 0.0
  %309 = vmatprep.mubr.f32.mxu0 0.0
  %310 = vmatmul.mubr.f32.gmra.mrb[0].mxu0 %v243
  %v311 = vpop.f32.mrb[0].mxu0
  %v312 = vadd.f32 0.0, %v311
  %v313 = vpop.f32.mrb[0].mxu0
  %314 = vdwg.mxu0
  %316 = vset.pattern.permute.xlu0 0
  %317 = vperm.xlu0 %316, %v198
  %v318 = vpop.permute.xlu0 %317
  %321 = vset.pattern.permute.xlu0 0
  %322 = vperm.xlu0 %321, %v203
  %v323 = vpop.permute.xlu0 %322
  %v325 = vlaneseq
  %v326 = vshrl.u32 %v325, 7
  %v327 = vsub.s32 0, %v326
  %v328 = vrot.slane %v312, %v327
  %v329 = vadd.f32 %v318, %v328
  %v330 = vadd.f32 %v323, %v328
  %vm331 = vcmp.gt.f32.partialorder %v329, 0.0
  %vm332 = vcmp.gt.f32.partialorder %v330, 0.0
  %v333 = vmul.f32 %v329, 0.2
  %v334 = vmul.f32 %v330, 0.2
  %v335 = vsel %vm331, %v329, %v333
  %v336 = vsel %vm332, %v330, %v334
  %v337 = vadd.f32 %v335, %v33
  %v338 = vadd.f32 %v336, %v34
  %vm339 = vcmask 130048
  %v340 = vsel %vm339, %v337, -inf
  %341 = vmax.xlane.f32.xlu0 %v340
  %v342 = vpop.xlane.xlu0 %341
  %v343 = vsel %vm339, %v338, -inf
  %344 = vmax.xlane.f32.xlu0 %v343
  %v345 = vpop.xlane.xlu0 %344
  %v346 = vsub.f32 %v337, %v342
  %v347 = vsub.f32 %v338, %v345
  %v348 = vmul.f32 %v346, 1.442695
  %v349 = vpow.pop %v348
  %v350 = vmul.f32 %v347, 1.442695
  %v351 = vpow.pop %v350
  %v352 = vsel %vm339, %v349, 0.0
  %353 = vadd.xlane.f32.xlu0 %v352
  %v354 = vpop.xlane.xlu0 %353
  %v355 = vsel %vm339, %v351, 0.0
  %356 = vadd.xlane.f32.xlu0 %v355
  %v357 = vpop.xlane.xlu0 %356
  %v358 = vmax.f32 %v354, 1e-30
  %v359 = vmax.f32 %v357, 1e-30
  %v360 = vrcp.pop %v358
  %v361 = vrcp.pop %v359
  %v362 = vmul.f32 %v349, %v360
  %v363 = vmul.f32 %v351, %v361
  %v365 = vsel %vm339, %v362, 0
  %v368 = vsel %vm339, %v363, 0
  %370 = vmatprep.subr.mxu0 0.0
  %371 = vmatpush1.msra.mxu0 %v113
  %372 = vmatprep.subr.mxu0 0.0
  %373 = vmatpush1.msra.mxu0 %v118
  %374 = vmatprep.subr.mxu0 0.0
  %375 = vmatpush1.msra.mxu0 0.0
  %376 = vmatprep.subr.mxu0 0.0
  %377 = vmatpush1.msra.mxu0 0.0
  %378 = vmatprep.subr.mxu0 0.0
  %379 = vmatpush1.msra.mxu0 0.0
  %380 = vmatprep.subr.mxu0 0.0
  %381 = vmatpush1.msra.mxu0 0.0
  %382 = vmatprep.subr.mxu0 0.0
  %383 = vmatpush1.msra.mxu0 0.0
  %384 = vmatprep.subr.mxu0 0.0
  %385 = vmatpush1.msra.mxu0 0.0
  %386 = vmatprep.subr.mxu0 0.0
  %387 = vmatpush1.msra.mxu0 0.0
  %388 = vmatprep.subr.mxu0 0.0
  %389 = vmatpush1.msra.mxu0 0.0
  %390 = vmatprep.subr.mxu0 0.0
  %391 = vmatpush1.msra.mxu0 0.0
  %392 = vmatprep.subr.mxu0 0.0
  %393 = vmatpush1.msra.mxu0 0.0
  %394 = vmatprep.subr.mxu0 0.0
  %395 = vmatpush1.msra.mxu0 0.0
  %396 = vmatprep.subr.mxu0 0.0
  %397 = vmatpush1.msra.mxu0 0.0
  %398 = vmatprep.subr.mxu0 0.0
  %399 = vmatpush1.msra.mxu0 0.0
  %400 = vmatprep.subr.mxu0 0.0
  %401 = vmatpush1.msra.mxu0 0.0
  %402 = vmatprep.subr.mxu0 0.0
  %403 = vmatpush1.msra.mxu0 0.0
  %404 = vmatprep.subr.mxu0 0.0
  %405 = vmatpush1.msra.mxu0 0.0
  %406 = vmatprep.subr.mxu0 0.0
  %407 = vmatpush1.msra.mxu0 0.0
  %408 = vmatprep.subr.mxu0 0.0
  %409 = vmatpush1.msra.mxu0 0.0
  %410 = vmatprep.subr.mxu0 0.0
  %411 = vmatpush1.msra.mxu0 0.0
  %412 = vmatprep.subr.mxu0 0.0
  %413 = vmatpush1.msra.mxu0 0.0
  %414 = vmatprep.subr.mxu0 0.0
  %415 = vmatpush1.msra.mxu0 0.0
  %416 = vmatprep.subr.mxu0 0.0
  %417 = vmatpush1.msra.mxu0 0.0
  %418 = vmatprep.subr.mxu0 0.0
  %419 = vmatpush1.msra.mxu0 0.0
  %420 = vmatprep.subr.mxu0 0.0
  %421 = vmatpush1.msra.mxu0 0.0
  %422 = vmatprep.subr.mxu0 0.0
  %423 = vmatpush1.msra.mxu0 0.0
  %424 = vmatprep.subr.mxu0 0.0
  %425 = vmatpush1.msra.mxu0 0.0
  %426 = vmatprep.subr.mxu0 0.0
  %427 = vmatpush1.msra.mxu0 0.0
  %428 = vmatprep.subr.mxu0 0.0
  %429 = vmatpush1.msra.mxu0 0.0
  %430 = vmatprep.subr.mxu0 0.0
  %431 = vmatpush1.msra.mxu0 0.0
  %432 = vmatprep.subr.mxu0 0.0
  %433 = vmatpush1.msra.mxu0 0.0
  %434 = vmatprep.mubr.f32.mxu0 0.0
  %435 = vmatmul.mubr.f32.gmra.mrb[0].mxu0 %v365
  %v436 = vpop.f32.mrb[0].mxu0
  %v437 = vadd.f32 0.0, %v436
  %v438 = vpop.f32.mrb[0].mxu0
  %439 = vmatprep.mubr.f32.mxu0 0.0
  %440 = vmatmul.mubr.f32.gmra.mrb[0].mxu0 %v368
  %v441 = vpop.f32.mrb[0].mxu0
  %v442 = vadd.f32 0.0, %v441
  %v443 = vpop.f32.mrb[0].mxu0
  %444 = vdwg.mxu0
  %445 = vset.pattern.permute.xlu0 1
  %446 = vperm.xlu0 %445, %v198
  %v447 = vpop.permute.xlu0 %446
  %449 = vset.pattern.permute.xlu0 1
  %450 = vperm.xlu0 %449, %v203
  %v451 = vpop.permute.xlu0 %450
  %v453 = vlaneseq
  %v454 = vshrl.u32 %v453, 7
  %v455 = vsub.s32 1, %v454
  %v456 = vrot.slane %v312, %v455
  %v457 = vadd.f32 %v447, %v456
  %v458 = vadd.f32 %v451, %v456
  %vm459 = vcmp.gt.f32.partialorder %v457, 0.0
  %vm460 = vcmp.gt.f32.partialorder %v458, 0.0
  %v461 = vmul.f32 %v457, 0.2
  %v462 = vmul.f32 %v458, 0.2
  %v463 = vsel %vm459, %v457, %v461
  %v464 = vsel %vm460, %v458, %v462
  %v465 = vadd.f32 %v463, %v33
  %v466 = vadd.f32 %v464, %v34
  %v467 = vsel %vm339, %v465, -inf
  %468 = vmax.xlane.f32.xlu0 %v467
  %v469 = vpop.xlane.xlu0 %468
  %v470 = vsel %vm339, %v466, -inf
  %471 = vmax.xlane.f32.xlu0 %v470
  %v472 = vpop.xlane.xlu0 %471
  %v473 = vsub.f32 %v465, %v469
  %v474 = vsub.f32 %v466, %v472
  %v475 = vmul.f32 %v473, 1.442695
  %v476 = vpow.pop %v475
  %v477 = vmul.f32 %v474, 1.442695
  %v478 = vpow.pop %v477
  %v479 = vsel %vm339, %v476, 0.0
  %480 = vadd.xlane.f32.xlu0 %v479
  %v481 = vpop.xlane.xlu0 %480
  %v482 = vsel %vm339, %v478, 0.0
  %483 = vadd.xlane.f32.xlu0 %v482
  %v484 = vpop.xlane.xlu0 %483
  %v485 = vmax.f32 %v481, 1e-30
  %v486 = vmax.f32 %v484, 1e-30
  %v487 = vrcp.pop %v485
  %v488 = vrcp.pop %v486
  %v489 = vmul.f32 %v476, %v487
  %v490 = vmul.f32 %v478, %v488
  %493 = vrot.lane.b32.xlu0 %v113, 112
  %v494 = vpop.permute.xlu0 %493
  %495 = vrot.lane.b32.xlu0 %v118, 112
  %v496 = vpop.permute.xlu0 %495
  %v500 = vsel %vm339, %v489, 0
  %v503 = vsel %vm339, %v490, 0
  %505 = vmatprep.subr.mxu0 0.0
  %506 = vmatpush1.msra.mxu0 %v494
  %507 = vmatprep.subr.mxu0 0.0
  %508 = vmatpush1.msra.mxu0 %v496
  %509 = vmatprep.subr.mxu0 0.0
  %510 = vmatpush1.msra.mxu0 0.0
  %511 = vmatprep.subr.mxu0 0.0
  %512 = vmatpush1.msra.mxu0 0.0
  %513 = vmatprep.subr.mxu0 0.0
  %514 = vmatpush1.msra.mxu0 0.0
  %515 = vmatprep.subr.mxu0 0.0
  %516 = vmatpush1.msra.mxu0 0.0
  %517 = vmatprep.subr.mxu0 0.0
  %518 = vmatpush1.msra.mxu0 0.0
  %519 = vmatprep.subr.mxu0 0.0
  %520 = vmatpush1.msra.mxu0 0.0
  %521 = vmatprep.subr.mxu0 0.0
  %522 = vmatpush1.msra.mxu0 0.0
  %523 = vmatprep.subr.mxu0 0.0
  %524 = vmatpush1.msra.mxu0 0.0
  %525 = vmatprep.subr.mxu0 0.0
  %526 = vmatpush1.msra.mxu0 0.0
  %527 = vmatprep.subr.mxu0 0.0
  %528 = vmatpush1.msra.mxu0 0.0
  %529 = vmatprep.subr.mxu0 0.0
  %530 = vmatpush1.msra.mxu0 0.0
  %531 = vmatprep.subr.mxu0 0.0
  %532 = vmatpush1.msra.mxu0 0.0
  %533 = vmatprep.subr.mxu0 0.0
  %534 = vmatpush1.msra.mxu0 0.0
  %535 = vmatprep.subr.mxu0 0.0
  %536 = vmatpush1.msra.mxu0 0.0
  %537 = vmatprep.subr.mxu0 0.0
  %538 = vmatpush1.msra.mxu0 0.0
  %539 = vmatprep.subr.mxu0 0.0
  %540 = vmatpush1.msra.mxu0 0.0
  %541 = vmatprep.subr.mxu0 0.0
  %542 = vmatpush1.msra.mxu0 0.0
  %543 = vmatprep.subr.mxu0 0.0
  %544 = vmatpush1.msra.mxu0 0.0
  %545 = vmatprep.subr.mxu0 0.0
  %546 = vmatpush1.msra.mxu0 0.0
  %547 = vmatprep.subr.mxu0 0.0
  %548 = vmatpush1.msra.mxu0 0.0
  %549 = vmatprep.subr.mxu0 0.0
  %550 = vmatpush1.msra.mxu0 0.0
  %551 = vmatprep.subr.mxu0 0.0
  %552 = vmatpush1.msra.mxu0 0.0
  %553 = vmatprep.subr.mxu0 0.0
  %554 = vmatpush1.msra.mxu0 0.0
  %555 = vmatprep.subr.mxu0 0.0
  %556 = vmatpush1.msra.mxu0 0.0
  %557 = vmatprep.subr.mxu0 0.0
  %558 = vmatpush1.msra.mxu0 0.0
  %559 = vmatprep.subr.mxu0 0.0
  %560 = vmatpush1.msra.mxu0 0.0
  %561 = vmatprep.subr.mxu0 0.0
  %562 = vmatpush1.msra.mxu0 0.0
  %563 = vmatprep.subr.mxu0 0.0
  %564 = vmatpush1.msra.mxu0 0.0
  %565 = vmatprep.subr.mxu0 0.0
  %566 = vmatpush1.msra.mxu0 0.0
  %567 = vmatprep.subr.mxu0 0.0
  %568 = vmatpush1.msra.mxu0 0.0
  %569 = vmatprep.mubr.f32.mxu0 0.0
  %570 = vmatmul.mubr.f32.gmra.mrb[0].mxu0 %v500
  %v571 = vpop.f32.mrb[0].mxu0
  %v572 = vadd.f32 0.0, %v571
  %v573 = vpop.f32.mrb[0].mxu0
  %574 = vmatprep.mubr.f32.mxu0 0.0
  %575 = vmatmul.mubr.f32.gmra.mrb[0].mxu0 %v503
  %v576 = vpop.f32.mrb[0].mxu0
  %v577 = vadd.f32 0.0, %v576
  %v578 = vpop.f32.mrb[0].mxu0
  %579 = vdwg.mxu0
  %v580 = vld [vmem:[%s6] sm:$0xff]
  %v581 = vld [vmem:[%s6 + $0x8] sm:$0xff]
  %v582 = vld [vmem:[%s6 + $0x10] sm:$0xff]
  %v583 = vld [vmem:[%s6 + $0x18] sm:$0xff]
  %v585 = vsel %vm339, %v572, 0
  %v588 = vsel %vm339, %v577, 0
  %590 = vmatprep.subr.mxu0 0.0
  %591 = vmatpush1.msra.mxu0 %v582
  %592 = vmatprep.subr.mxu0 0.0
  %593 = vmatpush1.msra.mxu0 %v583
  %594 = vmatprep.subr.mxu0 0.0
  %595 = vmatpush1.msra.mxu0 0.0
  %596 = vmatprep.subr.mxu0 0.0
  %597 = vmatpush1.msra.mxu0 0.0
  %598 = vmatprep.subr.mxu0 0.0
  %599 = vmatpush1.msra.mxu0 0.0
  %600 = vmatprep.subr.mxu0 0.0
  %601 = vmatpush1.msra.mxu0 0.0
  %602 = vmatprep.subr.mxu0 0.0
  %603 = vmatpush1.msra.mxu0 0.0
  %604 = vmatprep.subr.mxu0 0.0
  %605 = vmatpush1.msra.mxu0 0.0
  %606 = vmatprep.subr.mxu0 0.0
  %607 = vmatpush1.msra.mxu0 0.0
  %608 = vmatprep.subr.mxu0 0.0
  %609 = vmatpush1.msra.mxu0 0.0
  %610 = vmatprep.subr.mxu0 0.0
  %611 = vmatpush1.msra.mxu0 0.0
  %612 = vmatprep.subr.mxu0 0.0
  %613 = vmatpush1.msra.mxu0 0.0
  %614 = vmatprep.subr.mxu0 0.0
  %615 = vmatpush1.msra.mxu0 0.0
  %616 = vmatprep.subr.mxu0 0.0
  %617 = vmatpush1.msra.mxu0 0.0
  %618 = vmatprep.subr.mxu0 0.0
  %619 = vmatpush1.msra.mxu0 0.0
  %620 = vmatprep.subr.mxu0 0.0
  %621 = vmatpush1.msra.mxu0 0.0
  %622 = vmatprep.subr.mxu0 0.0
  %623 = vmatpush1.msra.mxu0 0.0
  %624 = vmatprep.subr.mxu0 0.0
  %625 = vmatpush1.msra.mxu0 0.0
  %626 = vmatprep.subr.mxu0 0.0
  %627 = vmatpush1.msra.mxu0 0.0
  %628 = vmatprep.subr.mxu0 0.0
  %629 = vmatpush1.msra.mxu0 0.0
  %630 = vmatprep.subr.mxu0 0.0
  %631 = vmatpush1.msra.mxu0 0.0
  %632 = vmatprep.subr.mxu0 0.0
  %633 = vmatpush1.msra.mxu0 0.0
  %634 = vmatprep.subr.mxu0 0.0
  %635 = vmatpush1.msra.mxu0 0.0
  %636 = vmatprep.subr.mxu0 0.0
  %637 = vmatpush1.msra.mxu0 0.0
  %638 = vmatprep.subr.mxu0 0.0
  %639 = vmatpush1.msra.mxu0 0.0
  %640 = vmatprep.subr.mxu0 0.0
  %641 = vmatpush1.msra.mxu0 0.0
  %642 = vmatprep.subr.mxu0 0.0
  %643 = vmatpush1.msra.mxu0 0.0
  %644 = vmatprep.subr.mxu0 0.0
  %645 = vmatpush1.msra.mxu0 0.0
  %646 = vmatprep.subr.mxu0 0.0
  %647 = vmatpush1.msra.mxu0 0.0
  %648 = vmatprep.subr.mxu0 0.0
  %649 = vmatpush1.msra.mxu0 0.0
  %650 = vmatprep.subr.mxu0 0.0
  %651 = vmatpush1.msra.mxu0 0.0
  %652 = vmatprep.subr.mxu0 0.0
  %653 = vmatpush1.msra.mxu0 0.0
  %654 = vmatprep.mubr.f32.mxu0 0.0
  %655 = vmatmul.mubr.f32.gmra.mrb[0].mxu0 %v585
  %v656 = vpop.f32.mrb[0].mxu0
  %v657 = vadd.f32 0.0, %v656
  %v658 = vpop.f32.mrb[0].mxu0
  %659 = vmatprep.mubr.f32.mxu0 0.0
  %660 = vmatmul.mubr.f32.gmra.mrb[0].mxu0 %v588
  %v661 = vpop.f32.mrb[0].mxu0
  %v662 = vadd.f32 0.0, %v661
  %v663 = vpop.f32.mrb[0].mxu0
  %664 = vdwg.mxu0
  %v666 = vsel %vm339, %v437, 0
  %v669 = vsel %vm339, %v442, 0
  %671 = vmatprep.subr.mxu0 0.0
  %672 = vmatpush1.msra.mxu0 %v580
  %673 = vmatprep.subr.mxu0 0.0
  %674 = vmatpush1.msra.mxu0 %v581
  %675 = vmatprep.subr.mxu0 0.0
  %676 = vmatpush1.msra.mxu0 0.0
  %677 = vmatprep.subr.mxu0 0.0
  %678 = vmatpush1.msra.mxu0 0.0
  %679 = vmatprep.subr.mxu0 0.0
  %680 = vmatpush1.msra.mxu0 0.0
  %681 = vmatprep.subr.mxu0 0.0
  %682 = vmatpush1.msra.mxu0 0.0
  %683 = vmatprep.subr.mxu0 0.0
  %684 = vmatpush1.msra.mxu0 0.0
  %685 = vmatprep.subr.mxu0 0.0
  %686 = vmatpush1.msra.mxu0 0.0
  %687 = vmatprep.subr.mxu0 0.0
  %688 = vmatpush1.msra.mxu0 0.0
  %689 = vmatprep.subr.mxu0 0.0
  %690 = vmatpush1.msra.mxu0 0.0
  %691 = vmatprep.subr.mxu0 0.0
  %692 = vmatpush1.msra.mxu0 0.0
  %693 = vmatprep.subr.mxu0 0.0
  %694 = vmatpush1.msra.mxu0 0.0
  %695 = vmatprep.subr.mxu0 0.0
  %696 = vmatpush1.msra.mxu0 0.0
  %697 = vmatprep.subr.mxu0 0.0
  %698 = vmatpush1.msra.mxu0 0.0
  %699 = vmatprep.subr.mxu0 0.0
  %700 = vmatpush1.msra.mxu0 0.0
  %701 = vmatprep.subr.mxu0 0.0
  %702 = vmatpush1.msra.mxu0 0.0
  %703 = vmatprep.subr.mxu0 0.0
  %704 = vmatpush1.msra.mxu0 0.0
  %705 = vmatprep.subr.mxu0 0.0
  %706 = vmatpush1.msra.mxu0 0.0
  %707 = vmatprep.subr.mxu0 0.0
  %708 = vmatpush1.msra.mxu0 0.0
  %709 = vmatprep.subr.mxu0 0.0
  %710 = vmatpush1.msra.mxu0 0.0
  %711 = vmatprep.subr.mxu0 0.0
  %712 = vmatpush1.msra.mxu0 0.0
  %713 = vmatprep.subr.mxu0 0.0
  %714 = vmatpush1.msra.mxu0 0.0
  %715 = vmatprep.subr.mxu0 0.0
  %716 = vmatpush1.msra.mxu0 0.0
  %717 = vmatprep.subr.mxu0 0.0
  %718 = vmatpush1.msra.mxu0 0.0
  %719 = vmatprep.subr.mxu0 0.0
  %720 = vmatpush1.msra.mxu0 0.0
  %721 = vmatprep.subr.mxu0 0.0
  %722 = vmatpush1.msra.mxu0 0.0
  %723 = vmatprep.subr.mxu0 0.0
  %724 = vmatpush1.msra.mxu0 0.0
  %725 = vmatprep.subr.mxu0 0.0
  %726 = vmatpush1.msra.mxu0 0.0
  %727 = vmatprep.subr.mxu0 0.0
  %728 = vmatpush1.msra.mxu0 0.0
  %729 = vmatprep.subr.mxu0 0.0
  %730 = vmatpush1.msra.mxu0 0.0
  %731 = vmatprep.subr.mxu0 0.0
  %732 = vmatpush1.msra.mxu0 0.0
  %733 = vmatprep.subr.mxu0 0.0
  %734 = vmatpush1.msra.mxu0 0.0
  %735 = vmatprep.mubr.f32.mxu0 0.0
  %736 = vmatmul.mubr.f32.gmra.mrb[0].mxu0 %v666
  %v737 = vpop.f32.mrb[0].mxu0
  %v738 = vadd.f32 %v657, %v737
  %v739 = vpop.f32.mrb[0].mxu0
  %740 = vmatprep.mubr.f32.mxu0 0.0
  %741 = vmatmul.mubr.f32.gmra.mrb[0].mxu0 %v669
  %v742 = vpop.f32.mrb[0].mxu0
  %v743 = vadd.f32 %v662, %v742
  %v744 = vpop.f32.mrb[0].mxu0
  %745 = vdwg.mxu0
  %v746 = vld [vmem:[%s7] sm:$0x1]
  %v748 = vlaneseq
  %v749 = vshrl.u32 %v748, 7
  %v750 = vsub.s32 0, %v749
  %v751 = vrot.slane %v746, %v750
  %v753 = vadd.f32 %v738, %v751
  %v754 = vadd.f32 %v743, %v751
  %755 = vst [vmem:[%s8] sm:$0xff] %v753
  %756 = vst [vmem:[%s8 + $0x8] sm:$0xff] %v754
  // Predicated region
  $region34: #{gat_forward.3} parent=0 // pred_check
    _
  $region35: #{gat_forward.3} parent=0 // pred_check_branch
    %758 = sbr.rel (0) target = $region37
  $region36: #{gat_forward.3} parent=0 // pred_region
    _
  $region37: #{gat_forward.3} parent=0 // pred_fallthru
    _
  // Predicated region
  $region38: #{gat_forward.3} parent=0 // pred_check
    _
  $region39: #{gat_forward.3} parent=0 // pred_check_branch
    %760 = sbr.rel (0) target = $region41
  $region40: #{gat_forward.3} parent=0 // pred_region
    _
  $region41: #{gat_forward.3} parent=0 // pred_fallthru
    _

</llo_original>
